<compile_context>
chip_gen: v6e
topology: v6e:2x2x1
jax: 0.10.0
libtpu: 0.0.40
codegen_flags: <defaults>
</compile_context>

<pallas_src>
import functools

import jax
import jax.numpy as jnp
from jax.experimental import pallas as pl
from jax.experimental.pallas import tpu as pltpu


def _cnnmax_kernel(x_ref, w_ref, scale_ref, shift_ref, o_ref,
                   *, k, d, w_conv, w_out):
    bn, th, _, ic = x_ref.shape          # (batch tile, row tile, w_pad, ic)
    oc = scale_ref.shape[1]

    # ---- dilated (1,k) conv as ONE MXU matmul over an im2col LHS -------------
    # Each tap is a contiguous static W-slice; concatenating the k shifted
    # slices along channels gives a single contraction of size k*ic.
    taps = [x_ref[:, :, t * d:t * d + w_conv, :] for t in range(k)]
    lhs = jnp.concatenate(taps, axis=-1).reshape(bn * th * w_conv, k * ic)
    acc = jnp.dot(lhs, w_ref[...], preferred_element_type=jnp.float32)

    # ---- conv bias + BatchNorm (running stats) folded into scale/shift (f32) --
    y = acc * scale_ref[...] + shift_ref[...]
    # ---- Swish: x * sigmoid(x) (sigmoid goes to the EUP slot) -----------------
    y = y * jax.nn.sigmoid(y)

    # ---- MaxPool2d((1,2), stride=2): the H stride was handled by the wrapper's
    # row subsample, so only the W-pair max remains.  Done on values (no scratch
    # round-trip, no strided sublane gathers): reshape + pairwise max (VPU only).
    y = y.reshape(bn * th, w_conv, oc)
    if w_conv != 2 * w_out:              # drop the odd trailing conv column
        y = y[:, : 2 * w_out, :]
    y = y.reshape(bn * th, w_out, 2, oc)
    y = jnp.maximum(y[:, :, 0, :], y[:, :, 1, :])

    # Lane-dense store: (w_out, oc) folded into the last (lane) dim.
    o_ref[...] = y.reshape(bn, th, w_out * oc).astype(o_ref.dtype)
    # TODO(synk): Dropout is identity (inference); training-mode BatchNorm batch
    # statistics are replaced by running stats.


def _pick_batch_tile(n, cap=8):
    for b in range(min(n, cap), 0, -1):
        if n % b == 0:
            return b
    return 1


def _pick_h_tile(h_out, cap=128):
    if h_out <= cap:
        return h_out
    for t in range(cap - cap % 8, 7, -8):      # multiple of 8 (sublane rule)
        if h_out % t == 0:
            return t
    return h_out


def cnnmax_forward(x_nchw, conv_w, conv_b, bn_gamma, bn_beta, bn_mean, bn_var,
                   *, k, d, p, eps=1e-5, use_bf16=False):
    n, ic, h, w = x_nchw.shape
    oc = conv_w.shape[0]
    w_pad = w + 2 * p
    w_conv = w_pad - d * (k - 1)           # dilated conv output width
    h_out = (h - 1) // 2 + 1               # pool kernel height 1, stride 2
    w_out = (w_conv - 2) // 2 + 1          # pool kernel width 2, stride 2

    mxu_dtype = jnp.bfloat16 if use_bf16 else jnp.float32

    # The (1,2)-stride-2 pool keeps only even rows -> subsample H BEFORE the
    # conv, then pad W and go NHWC (XLA fuses slice+pad+transpose into one pass).
    # TODO(synk): in an NHWC end-to-end model the transposes would be dropped and
    # the width padding folded into the kernel via edge-tap masking.
    x_sub = x_nchw[:, :, ::2, :]
    xp = jnp.pad(x_sub, ((0, 0), (0, 0), (0, 0), (p, p)))
    x_nhwc = jnp.transpose(xp, (0, 2, 3, 1)).astype(mxu_dtype)

    # torch conv weight (OC, IC, 1, K) -> im2col weight (K*IC, OC), tap-major.
    w2 = jnp.transpose(conv_w[:, :, 0, :], (2, 1, 0)).reshape(k * ic, oc)
    w2 = w2.astype(mxu_dtype)

    # Fold conv bias + eval-mode BN into one per-channel scale / shift (f32).
    scale = (bn_gamma / jnp.sqrt(bn_var + eps)).astype(jnp.float32)
    shift = ((conv_b - bn_mean) * scale + bn_beta).astype(jnp.float32)
    scale = scale.reshape(1, oc)
    shift = shift.reshape(1, oc)

    bn_blk = _pick_batch_tile(n)           # images per grid step
    th = _pick_h_tile(h_out)               # output rows per grid step
    grid = (n // bn_blk, h_out // th)

    kernel = functools.partial(_cnnmax_kernel, k=k, d=d,
                               w_conv=w_conv, w_out=w_out)

    # NOTE: for production-size H/W, shrink th (or raise vmem_limit_bytes) so the
    # double-buffered (bn_blk, th, w_pad, ic) input block fits scoped VMEM.
    out_flat = pl.pallas_call(
        kernel,
        out_shape=jax.ShapeDtypeStruct((n, h_out, w_out * oc), jnp.float32),
        grid=grid,
        in_specs=[
            pl.BlockSpec((bn_blk, th, w_pad, ic), lambda b, hh: (b, hh, 0, 0)),
            pl.BlockSpec((k * ic, oc), lambda b, hh: (0, 0)),
            pl.BlockSpec((1, oc), lambda b, hh: (0, 0)),
            pl.BlockSpec((1, oc), lambda b, hh: (0, 0)),
        ],
        out_specs=pl.BlockSpec((bn_blk, th, w_out * oc),
                               lambda b, hh: (b, hh, 0)),
        compiler_params=pltpu.CompilerParams(
            dimension_semantics=("parallel", "parallel")),
    )(x_nhwc, w2, scale, shift)

    out_nhwc = out_flat.reshape(n, h_out, w_out, oc)
    return jnp.transpose(out_nhwc, (0, 3, 1, 2))    # back to NCHW


def _reference(x, conv_w, conv_b, gamma, beta, mean, var, *, k, d, p, eps=1e-5):
    """Pure-JAX reference (same inference semantics)."""
    xp = jnp.pad(x, ((0, 0), (0, 0), (0, 0), (p, p)))
    y = jax.lax.conv_general_dilated(
        xp, conv_w, window_strides=(1, 1), padding="VALID",
        rhs_dilation=(1, d), dimension_numbers=("NCHW", "OIHW", "NCHW"))
    y = y + conv_b[None, :, None, None]
    y = (y - mean[None, :, None, None]) / jnp.sqrt(var[None, :, None, None] + eps)
    y = y * gamma[None, :, None, None] + beta[None, :, None, None]
    y = y * jax.nn.sigmoid(y)
    y = jax.lax.reduce_window(y, -jnp.inf, jax.lax.max,
                              (1, 1, 1, 2), (1, 1, 2, 2), "VALID")
    return y


if __name__ == "__main__":
    key = jax.random.PRNGKey(0)
    N, IC, OC, H, W = 2, 4, 8, 16, 16
    K, D, P = 3, 2, 2   # kernel size, dilation, pad (both sides of W)

    ks = jax.random.split(key, 7)
    x = jax.random.normal(ks[0], (N, IC, H, W), jnp.float32)
    conv_w = jax.random.normal(ks[1], (OC, IC, 1, K), jnp.float32) / jnp.sqrt(IC * K)
    conv_b = 0.1 * jax.random.normal(ks[2], (OC,), jnp.float32)
    gamma = 1.0 + 0.1 * jax.random.normal(ks[3], (OC,), jnp.float32)
    beta = 0.1 * jax.random.normal(ks[4], (OC,), jnp.float32)
    mean = 0.1 * jax.random.normal(ks[5], (OC,), jnp.float32)
    var = 1.0 + 0.1 * jnp.abs(jax.random.normal(ks[6], (OC,), jnp.float32))

    ref = _reference(x, conv_w, conv_b, gamma, beta, mean, var, k=K, d=D, p=P)

    # f32 MXU path — matches the reference tightly.
    out = cnnmax_forward(x, conv_w, conv_b, gamma, beta, mean, var,
                         k=K, d=D, p=P, use_bf16=False)
    out = jax.block_until_ready(out)
    assert out.shape == ref.shape, (out.shape, ref.shape)
    assert jnp.allclose(out, ref, atol=1e-4, rtol=1e-4)

    # bf16 MXU-operand path (v6e/v7x fast path) — looser tolerance.
    out_bf16 = cnnmax_forward(x, conv_w, conv_b, gamma, beta, mean, var,
                              k=K, d=D, p=P, use_bf16=True)
    out_bf16 = jax.block_until_ready(out_bf16)
    assert jnp.allclose(out_bf16, ref, atol=1e-1, rtol=1e-1)

    print("KERNEL_OK")
</pallas_src>

<mosaic_0001>
module attributes {stable_mosaic.version = 11 : i64} {
  func.func @_cnnmax_kernel(%arg0: i32, %arg1: i32, %arg2: memref<2x8x20x4xf32, #tpu.memory_space<vmem>>, %arg3: memref<12x8xf32, #tpu.memory_space<vmem>>, %arg4: memref<1x8xf32, #tpu.memory_space<vmem>>, %arg5: memref<1x8xf32, #tpu.memory_space<vmem>>, %arg6: memref<2x8x64xf32, #tpu.memory_space<vmem>>) attributes {dimension_semantics = [#tpu.dimension_semantics<parallel>, #tpu.dimension_semantics<parallel>], iteration_bounds = array<i64: 1, 1>, scalar_prefetch = 0 : i64, scratch_operands = 0 : i64, tpu.core_type = #tpu.core_type<tc>, window_params = [{transform_indices = @transform_0, window_bounds = array<i64: 2, 8, 20, 4>}, {pipeline_mode = #tpu.pipeline_mode<synchronous>, transform_indices = @transform_1, window_bounds = array<i64: 12, 8>}, {pipeline_mode = #tpu.pipeline_mode<synchronous>, transform_indices = @transform_2, window_bounds = array<i64: 1, 8>}, {pipeline_mode = #tpu.pipeline_mode<synchronous>, transform_indices = @transform_3, window_bounds = array<i64: 1, 8>}, {transform_indices = @transform_4, window_bounds = array<i64: 2, 8, 64>}]} {
    %c0 = arith.constant 0 : index
    %c0_0 = arith.constant 0 : index
    %c0_1 = arith.constant 0 : index
    %c0_2 = arith.constant 0 : index
    %0 = vector.load %arg2[%c0, %c0_0, %c0_1, %c0_2] : memref<2x8x20x4xf32, #tpu.memory_space<vmem>>, vector<2x8x16x4xf32>
    %c0_3 = arith.constant 0 : index
    %c0_4 = arith.constant 0 : index
    %c2 = arith.constant 2 : index
    %c0_5 = arith.constant 0 : index
    %1 = vector.load %arg2[%c0_3, %c0_4, %c2, %c0_5] : memref<2x8x20x4xf32, #tpu.memory_space<vmem>>, vector<2x8x16x4xf32>
    %c0_6 = arith.constant 0 : index
    %c0_7 = arith.constant 0 : index
    %c4 = arith.constant 4 : index
    %c0_8 = arith.constant 0 : index
    %2 = vector.load %arg2[%c0_6, %c0_7, %c4, %c0_8] : memref<2x8x20x4xf32, #tpu.memory_space<vmem>>, vector<2x8x16x4xf32>
    %3 = tpu.concatenate %0, %1, %2 in 3 : vector<2x8x16x4xf32>, vector<2x8x16x4xf32>, vector<2x8x16x4xf32> -> vector<2x8x16x12xf32>
    %4 = vector.shape_cast %3 : vector<2x8x16x12xf32> to vector<256x12xf32>
    %c0_9 = arith.constant 0 : index
    %c0_10 = arith.constant 0 : index
    %5 = vector.load %arg3[%c0_9, %c0_10] : memref<12x8xf32, #tpu.memory_space<vmem>>, vector<12x8xf32>
    %cst = arith.constant dense<0.000000e+00> : vector<256x8xf32>
    %6 = tpu.matmul %4, %5, %cst {dimension_numbers = #tpu.dot_dimension_numbers<[1], [0], [0], [1], [0, 0, 1, 1], [], []>} : vector<256x12xf32>, vector<12x8xf32>, vector<256x8xf32> -> vector<256x8xf32>
    %c0_11 = arith.constant 0 : index
    %c0_12 = arith.constant 0 : index
    %7 = vector.load %arg4[%c0_11, %c0_12] : memref<1x8xf32, #tpu.memory_space<vmem>>, vector<1x8xf32>
    %8 = vector.broadcast %7 : vector<1x8xf32> to vector<256x8xf32>
    %9 = arith.mulf %6, %8 : vector<256x8xf32>
    %c0_13 = arith.constant 0 : index
    %c0_14 = arith.constant 0 : index
    %10 = vector.load %arg5[%c0_13, %c0_14] : memref<1x8xf32, #tpu.memory_space<vmem>>, vector<1x8xf32>
    %11 = vector.broadcast %10 : vector<1x8xf32> to vector<256x8xf32>
    %12 = arith.addf %9, %11 : vector<256x8xf32>
    %13 = arith.negf %12 : vector<256x8xf32>
    %14 = math.exp %13 : vector<256x8xf32>
    %cst_15 = arith.constant 1.000000e+00 : f32
    %15 = vector.broadcast %cst_15 : f32 to vector<256x8xf32>
    %16 = arith.addf %15, %14 : vector<256x8xf32>
    %17 = arith.divf %15, %16 : vector<256x8xf32>
    %18 = arith.mulf %12, %17 : vector<256x8xf32>
    %19 = vector.shape_cast %18 : vector<256x8xf32> to vector<16x16x8xf32>
    %20 = vector.shape_cast %19 : vector<16x16x8xf32> to vector<16x8x2x8xf32>
    %21 = vector.extract_strided_slice %20 {offsets = [0, 0, 0, 0], sizes = [16, 8, 1, 8], strides = [1, 1, 1, 1]} : vector<16x8x2x8xf32> to vector<16x8x1x8xf32>
    %22 = vector.shape_cast %21 : vector<16x8x1x8xf32> to vector<16x8x8xf32>
    %23 = vector.extract_strided_slice %20 {offsets = [0, 0, 1, 0], sizes = [16, 8, 1, 8], strides = [1, 1, 1, 1]} : vector<16x8x2x8xf32> to vector<16x8x1x8xf32>
    %24 = vector.shape_cast %23 : vector<16x8x1x8xf32> to vector<16x8x8xf32>
    %25 = arith.maximumf %22, %24 : vector<16x8x8xf32>
    %26 = vector.shape_cast %25 : vector<16x8x8xf32> to vector<2x8x64xf32>
    %c0_16 = arith.constant 0 : index
    %c0_17 = arith.constant 0 : index
    %c0_18 = arith.constant 0 : index
    %27 = vector.load %arg6[%c0_16, %c0_17, %c0_18] : memref<2x8x64xf32, #tpu.memory_space<vmem>>, vector<2x8x64xf32>
    tpu.vector_store %arg6[%c0_16, %c0_17, %c0_18], %26 {strides = array<i32>} : memref<2x8x64xf32, #tpu.memory_space<vmem>>, vector<2x8x64xf32>,
    return
  }
  func.func @transform_0(%arg0: i32, %arg1: i32) -> (i32, i32, i32, i32) {
    %c0_i32 = arith.constant 0 : i32
    %c0_i32_0 = arith.constant 0 : i32
    %c0_i32_1 = arith.constant 0 : i32
    return %arg0, %arg1, %c0_i32, %c0_i32_0 : i32, i32, i32, i32
  }
  func.func @transform_1(%arg0: i32, %arg1: i32) -> (i32, i32) {
    %c0_i32 = arith.constant 0 : i32
    %c0_i32_0 = arith.constant 0 : i32
    %c0_i32_1 = arith.constant 0 : i32
    return %c0_i32, %c0_i32_0 : i32, i32
  }
  func.func @transform_2(%arg0: i32, %arg1: i32) -> (i32, i32) {
    %c0_i32 = arith.constant 0 : i32
    %c0_i32_0 = arith.constant 0 : i32
    %c0_i32_1 = arith.constant 0 : i32
    return %c0_i32, %c0_i32_0 : i32, i32
  }
  func.func @transform_3(%arg0: i32, %arg1: i32) -> (i32, i32) {
    %c0_i32 = arith.constant 0 : i32
    %c0_i32_0 = arith.constant 0 : i32
    %c0_i32_1 = arith.constant 0 : i32
    return %c0_i32, %c0_i32_0 : i32, i32
  }
  func.func @transform_4(%arg0: i32, %arg1: i32) -> (i32, i32, i32) {
    %c0_i32 = arith.constant 0 : i32
    %c0_i32_0 = arith.constant 0 : i32
    return %arg0, %arg1, %c0_i32 : i32, i32, i32
  }
}

</mosaic_0001>

<llo_original>
// kernel: tpu_custom_call.1
$region0: #{tpu_custom_call.1}
  #allocation0 [shape = 'u32[]', space=smem, size = 0x4, offset = 0x4, fixed_abs, tag = 'smem constant byte address 0x4 - core index']
  #allocation1 [shape = 'u32[144,128]{1,0:T(1,128)}', space=vmem, size = 0x12000, scoped, tag = 'internal scratch']
  %s0 = inlined_call_operand.vmem [shape: f32[2,8,20,4], index: 0, kind: input, shape index: {}]
  %s1 = inlined_call_operand.vmem [shape: f32[12,8], index: 1, kind: input, shape index: {}]
  %s2 = inlined_call_operand.vmem [shape: f32[1,8], index: 2, kind: input, shape index: {}]
  %s3 = inlined_call_operand.vmem [shape: f32[1,8], index: 3, kind: input, shape index: {}]
  %s4 = inlined_call_operand.hbm [shape: f32[2,8,64], index: 4, kind: output, shape index: {}]
  %s5 = sld [smem:[#allocation0]]
  $region26: #{tpu_custom_call.1} parent=0
    _
  %s7 = ssub.s32 1, %s5
  %s8 = scalar_select 0, %s7, %s5
  $region1: #{tpu_custom_call.1} parent=0
    #allocation2 [shape = 'u8[8192]{0}', space=vmem, size = 0x2000, scoped, tag = 'output window, operand 0, single buffered']
    #allocation3 [shape = 's32[1]{0}', space=sflag, size = 0x4, scoped, tag = 'scoped memory for tpu_custom_call.1']
    %9 = vsyncpa [#allocation3], 0
    // Predicated region
    $region2: #{tpu_custom_call.1} parent=1 // pred_check
      _
    $region3: #{tpu_custom_call.1} parent=1 // pred_check_branch
      %11 = sbr.rel (0) target = $region5
    $region4: #{tpu_custom_call.1} parent=1 // pred_region
      _
    $region5: #{tpu_custom_call.1} parent=1 // pred_fallthru
      _
    // Predicated region
    $region6: #{tpu_custom_call.1} parent=1 // pred_check
      _
    $region7: #{tpu_custom_call.1} parent=1 // pred_check_branch
      %13 = sbr.rel (0) target = $region9
    $region8: #{tpu_custom_call.1} parent=1 // pred_region
      _
    $region9: #{tpu_custom_call.1} parent=1 // pred_fallthru
      _
    // Predicated region
    $region10: #{tpu_custom_call.1} parent=1 // pred_check
      _
    $region11: #{tpu_custom_call.1} parent=1 // pred_check_branch
      %15 = sbr.rel (0) target = $region13
    $region12: #{tpu_custom_call.1} parent=1 // pred_region
      _
    $region13: #{tpu_custom_call.1} parent=1 // pred_fallthru
      _
    // Predicated region
    $region14: #{tpu_custom_call.1} parent=1 // pred_check
      _
    $region15: #{tpu_custom_call.1} parent=1 // pred_check_branch
      %17 = sbr.rel (0) target = $region17
    $region16: #{tpu_custom_call.1} parent=1 // pred_region
      _
    $region17: #{tpu_custom_call.1} parent=1 // pred_fallthru
      _
    %v18 = vld [vmem:[%s0] sm:$0xff]
    %v19 = vld [vmem:[%s0 + $0x8] sm:$0xff]
    %v20 = vld [vmem:[%s0 + $0x18] sm:$0xff]
    %v21 = vld [vmem:[%s0 + $0x20] sm:$0xff]
    %v22 = vld [vmem:[%s0 + $0x30] sm:$0xff]
    %v23 = vld [vmem:[%s0 + $0x38] sm:$0xff]
    %v24 = vld [vmem:[%s0 + $0x48] sm:$0xff]
    %v25 = vld [vmem:[%s0 + $0x50] sm:$0xff]
    %v26 = vld [vmem:[%s0 + $0x60] sm:$0xff]
    %v27 = vld [vmem:[%s0 + $0x68] sm:$0xff]
    %v28 = vld [vmem:[%s0 + $0x78] sm:$0xff]
    %v29 = vld [vmem:[%s0 + $0x80] sm:$0xff]
    %v30 = vld [vmem:[%s0 + $0x90] sm:$0xff]
    %v31 = vld [vmem:[%s0 + $0x98] sm:$0xff]
    %v32 = vld [vmem:[%s0 + $0xa8] sm:$0xff]
    %v33 = vld [vmem:[%s0 + $0xb0] sm:$0xff]
    %v34 = vld [vmem:[%s0 + $0xc0] sm:$0xff]
    %v35 = vld [vmem:[%s0 + $0xc8] sm:$0xff]
    %v36 = vld [vmem:[%s0 + $0xd8] sm:$0xff]
    %v37 = vld [vmem:[%s0 + $0xe0] sm:$0xff]
    %v38 = vld [vmem:[%s0 + $0xf0] sm:$0xff]
    %v39 = vld [vmem:[%s0 + $0xf8] sm:$0xff]
    %v40 = vld [vmem:[%s0 + $0x108] sm:$0xff]
    %v41 = vld [vmem:[%s0 + $0x110] sm:$0xff]
    %v42 = vld [vmem:[%s0 + $0x120] sm:$0xff]
    %v43 = vld [vmem:[%s0 + $0x128] sm:$0xff]
    %v44 = vld [vmem:[%s0 + $0x138] sm:$0xff]
    %v45 = vld [vmem:[%s0 + $0x140] sm:$0xff]
    %v46 = vld [vmem:[%s0 + $0x150] sm:$0xff]
    %v47 = vld [vmem:[%s0 + $0x158] sm:$0xff]
    %v48 = vld [vmem:[%s0 + $0x168] sm:$0xff]
    %v49 = vld [vmem:[%s0 + $0x170] sm:$0xff]
    %v50 = vld [vmem:[%s0 + $0x2] sm:$0xff]
    %v51 = vld [vmem:[%s0 + $0xa] sm:$0xff]
    %v52 = vld [vmem:[%s0 + $0x1a] sm:$0xff]
    %v53 = vld [vmem:[%s0 + $0x22] sm:$0xff]
    %v54 = vld [vmem:[%s0 + $0x32] sm:$0xff]
    %v55 = vld [vmem:[%s0 + $0x3a] sm:$0xff]
    %v56 = vld [vmem:[%s0 + $0x4a] sm:$0xff]
    %v57 = vld [vmem:[%s0 + $0x52] sm:$0xff]
    %v58 = vld [vmem:[%s0 + $0x62] sm:$0xff]
    %v59 = vld [vmem:[%s0 + $0x6a] sm:$0xff]
    %v60 = vld [vmem:[%s0 + $0x7a] sm:$0xff]
    %v61 = vld [vmem:[%s0 + $0x82] sm:$0xff]
    %v62 = vld [vmem:[%s0 + $0x92] sm:$0xff]
    %v63 = vld [vmem:[%s0 + $0x9a] sm:$0xff]
    %v64 = vld [vmem:[%s0 + $0xaa] sm:$0xff]
    %v65 = vld [vmem:[%s0 + $0xb2] sm:$0xff]
    %v66 = vld [vmem:[%s0 + $0xc2] sm:$0xff]
    %v67 = vld [vmem:[%s0 + $0xca] sm:$0xff]
    %v68 = vld [vmem:[%s0 + $0xda] sm:$0xff]
    %v69 = vld [vmem:[%s0 + $0xe2] sm:$0xff]
    %v70 = vld [vmem:[%s0 + $0xf2] sm:$0xff]
    %v71 = vld [vmem:[%s0 + $0xfa] sm:$0xff]
    %v72 = vld [vmem:[%s0 + $0x10a] sm:$0xff]
    %v73 = vld [vmem:[%s0 + $0x112] sm:$0xff]
    %v74 = vld [vmem:[%s0 + $0x122] sm:$0xff]
    %v75 = vld [vmem:[%s0 + $0x12a] sm:$0xff]
    %v76 = vld [vmem:[%s0 + $0x13a] sm:$0xff]
    %v77 = vld [vmem:[%s0 + $0x142] sm:$0xff]
    %v78 = vld [vmem:[%s0 + $0x152] sm:$0xff]
    %v79 = vld [vmem:[%s0 + $0x15a] sm:$0xff]
    %v80 = vld [vmem:[%s0 + $0x16a] sm:$0xff]
    %v81 = vld [vmem:[%s0 + $0x172] sm:$0xff]
    %v82 = vld [vmem:[%s0 + $0x4] sm:$0xff]
    %v83 = vld [vmem:[%s0 + $0xc] sm:$0xff]
    %v84 = vld [vmem:[%s0 + $0x1c] sm:$0xff]
    %v85 = vld [vmem:[%s0 + $0x24] sm:$0xff]
    %v86 = vld [vmem:[%s0 + $0x34] sm:$0xff]
    %v87 = vld [vmem:[%s0 + $0x3c] sm:$0xff]
    %v88 = vld [vmem:[%s0 + $0x4c] sm:$0xff]
    %v89 = vld [vmem:[%s0 + $0x54] sm:$0xff]
    %v90 = vld [vmem:[%s0 + $0x64] sm:$0xff]
    %v91 = vld [vmem:[%s0 + $0x6c] sm:$0xff]
    %v92 = vld [vmem:[%s0 + $0x7c] sm:$0xff]
    %v93 = vld [vmem:[%s0 + $0x84] sm:$0xff]
    %v94 = vld [vmem:[%s0 + $0x94] sm:$0xff]
    %v95 = vld [vmem:[%s0 + $0x9c] sm:$0xff]
    %v96 = vld [vmem:[%s0 + $0xac] sm:$0xff]
    %v97 = vld [vmem:[%s0 + $0xb4] sm:$0xff]
    %v98 = vld [vmem:[%s0 + $0xc4] sm:$0xff]
    %v99 = vld [vmem:[%s0 + $0xcc] sm:$0xff]
    %v100 = vld [vmem:[%s0 + $0xdc] sm:$0xff]
    %v101 = vld [vmem:[%s0 + $0xe4] sm:$0xff]
    %v102 = vld [vmem:[%s0 + $0xf4] sm:$0xff]
    %v103 = vld [vmem:[%s0 + $0xfc] sm:$0xff]
    %v104 = vld [vmem:[%s0 + $0x10c] sm:$0xff]
    %v105 = vld [vmem:[%s0 + $0x114] sm:$0xff]
    %v106 = vld [vmem:[%s0 + $0x124] sm:$0xff]
    %v107 = vld [vmem:[%s0 + $0x12c] sm:$0xff]
    %v108 = vld [vmem:[%s0 + $0x13c] sm:$0xff]
    %v109 = vld [vmem:[%s0 + $0x144] sm:$0xff]
    %v110 = vld [vmem:[%s0 + $0x154] sm:$0xff]
    %v111 = vld [vmem:[%s0 + $0x15c] sm:$0xff]
    %v112 = vld [vmem:[%s0 + $0x16c] sm:$0xff]
    %v113 = vld [vmem:[%s0 + $0x174] sm:$0xff]
    %146 = vrot.lane.b32.xlu0 %v50, 4
    %v147 = vpop.permute.xlu0 %146
    %148 = vrot.lane.b32.xlu0 %v51, 4
    %v149 = vpop.permute.xlu0 %148
    %150 = vrot.lane.b32.xlu0 %v52, 4
    %v151 = vpop.permute.xlu0 %150
    %152 = vrot.lane.b32.xlu0 %v53, 4
    %v153 = vpop.permute.xlu0 %152
    %154 = vrot.lane.b32.xlu0 %v54, 4
    %v155 = vpop.permute.xlu0 %154
    %156 = vrot.lane.b32.xlu0 %v55, 4
    %v157 = vpop.permute.xlu0 %156
    %158 = vrot.lane.b32.xlu0 %v56, 4
    %v159 = vpop.permute.xlu0 %158
    %160 = vrot.lane.b32.xlu0 %v57, 4
    %v161 = vpop.permute.xlu0 %160
    %162 = vrot.lane.b32.xlu0 %v58, 4
    %v163 = vpop.permute.xlu0 %162
    %164 = vrot.lane.b32.xlu0 %v59, 4
    %v165 = vpop.permute.xlu0 %164
    %166 = vrot.lane.b32.xlu0 %v60, 4
    %v167 = vpop.permute.xlu0 %166
    %168 = vrot.lane.b32.xlu0 %v61, 4
    %v169 = vpop.permute.xlu0 %168
    %170 = vrot.lane.b32.xlu0 %v62, 4
    %v171 = vpop.permute.xlu0 %170
    %172 = vrot.lane.b32.xlu0 %v63, 4
    %v173 = vpop.permute.xlu0 %172
    %174 = vrot.lane.b32.xlu0 %v64, 4
    %v175 = vpop.permute.xlu0 %174
    %176 = vrot.lane.b32.xlu0 %v65, 4
    %v177 = vpop.permute.xlu0 %176
    %178 = vrot.lane.b32.xlu0 %v66, 4
    %v179 = vpop.permute.xlu0 %178
    %180 = vrot.lane.b32.xlu0 %v67, 4
    %v181 = vpop.permute.xlu0 %180
    %182 = vrot.lane.b32.xlu0 %v68, 4
    %v183 = vpop.permute.xlu0 %182
    %184 = vrot.lane.b32.xlu0 %v69, 4
    %v185 = vpop.permute.xlu0 %184
    %186 = vrot.lane.b32.xlu0 %v70, 4
    %v187 = vpop.permute.xlu0 %186
    %188 = vrot.lane.b32.xlu0 %v71, 4
    %v189 = vpop.permute.xlu0 %188
    %190 = vrot.lane.b32.xlu0 %v72, 4
    %v191 = vpop.permute.xlu0 %190
    %192 = vrot.lane.b32.xlu0 %v73, 4
    %v193 = vpop.permute.xlu0 %192
    %194 = vrot.lane.b32.xlu0 %v74, 4
    %v195 = vpop.permute.xlu0 %194
    %196 = vrot.lane.b32.xlu0 %v75, 4
    %v197 = vpop.permute.xlu0 %196
    %198 = vrot.lane.b32.xlu0 %v76, 4
    %v199 = vpop.permute.xlu0 %198
    %200 = vrot.lane.b32.xlu0 %v77, 4
    %v201 = vpop.permute.xlu0 %200
    %202 = vrot.lane.b32.xlu0 %v78, 4
    %v203 = vpop.permute.xlu0 %202
    %204 = vrot.lane.b32.xlu0 %v79, 4
    %v205 = vpop.permute.xlu0 %204
    %206 = vrot.lane.b32.xlu0 %v80, 4
    %v207 = vpop.permute.xlu0 %206
    %208 = vrot.lane.b32.xlu0 %v81, 4
    %v209 = vpop.permute.xlu0 %208
    %274 = vrot.lane.b32.xlu0 %v82, 8
    %v275 = vpop.permute.xlu0 %274
    %276 = vrot.lane.b32.xlu0 %v83, 8
    %v277 = vpop.permute.xlu0 %276
    %278 = vrot.lane.b32.xlu0 %v84, 8
    %v279 = vpop.permute.xlu0 %278
    %280 = vrot.lane.b32.xlu0 %v85, 8
    %v281 = vpop.permute.xlu0 %280
    %282 = vrot.lane.b32.xlu0 %v86, 8
    %v283 = vpop.permute.xlu0 %282
    %284 = vrot.lane.b32.xlu0 %v87, 8
    %v285 = vpop.permute.xlu0 %284
    %286 = vrot.lane.b32.xlu0 %v88, 8
    %v287 = vpop.permute.xlu0 %286
    %288 = vrot.lane.b32.xlu0 %v89, 8
    %v289 = vpop.permute.xlu0 %288
    %290 = vrot.lane.b32.xlu0 %v90, 8
    %v291 = vpop.permute.xlu0 %290
    %292 = vrot.lane.b32.xlu0 %v91, 8
    %v293 = vpop.permute.xlu0 %292
    %294 = vrot.lane.b32.xlu0 %v92, 8
    %v295 = vpop.permute.xlu0 %294
    %296 = vrot.lane.b32.xlu0 %v93, 8
    %v297 = vpop.permute.xlu0 %296
    %298 = vrot.lane.b32.xlu0 %v94, 8
    %v299 = vpop.permute.xlu0 %298
    %300 = vrot.lane.b32.xlu0 %v95, 8
    %v301 = vpop.permute.xlu0 %300
    %302 = vrot.lane.b32.xlu0 %v96, 8
    %v303 = vpop.permute.xlu0 %302
    %304 = vrot.lane.b32.xlu0 %v97, 8
    %v305 = vpop.permute.xlu0 %304
    %306 = vrot.lane.b32.xlu0 %v98, 8
    %v307 = vpop.permute.xlu0 %306
    %308 = vrot.lane.b32.xlu0 %v99, 8
    %v309 = vpop.permute.xlu0 %308
    %310 = vrot.lane.b32.xlu0 %v100, 8
    %v311 = vpop.permute.xlu0 %310
    %312 = vrot.lane.b32.xlu0 %v101, 8
    %v313 = vpop.permute.xlu0 %312
    %314 = vrot.lane.b32.xlu0 %v102, 8
    %v315 = vpop.permute.xlu0 %314
    %316 = vrot.lane.b32.xlu0 %v103, 8
    %v317 = vpop.permute.xlu0 %316
    %318 = vrot.lane.b32.xlu0 %v104, 8
    %v319 = vpop.permute.xlu0 %318
    %320 = vrot.lane.b32.xlu0 %v105, 8
    %v321 = vpop.permute.xlu0 %320
    %322 = vrot.lane.b32.xlu0 %v106, 8
    %v323 = vpop.permute.xlu0 %322
    %324 = vrot.lane.b32.xlu0 %v107, 8
    %v325 = vpop.permute.xlu0 %324
    %326 = vrot.lane.b32.xlu0 %v108, 8
    %v327 = vpop.permute.xlu0 %326
    %328 = vrot.lane.b32.xlu0 %v109, 8
    %v329 = vpop.permute.xlu0 %328
    %330 = vrot.lane.b32.xlu0 %v110, 8
    %v331 = vpop.permute.xlu0 %330
    %332 = vrot.lane.b32.xlu0 %v111, 8
    %v333 = vpop.permute.xlu0 %332
    %334 = vrot.lane.b32.xlu0 %v112, 8
    %v335 = vpop.permute.xlu0 %334
    %336 = vrot.lane.b32.xlu0 %v113, 8
    %v337 = vpop.permute.xlu0 %336
    %vm370 = vcmask 31744
    %v371 = vsel %vm370, %v18, %v147
    %v372 = vsel %vm370, %v19, %v149
    %v373 = vsel %vm370, %v20, %v151
    %v374 = vsel %vm370, %v21, %v153
    %v375 = vsel %vm370, %v22, %v155
    %v376 = vsel %vm370, %v23, %v157
    %v377 = vsel %vm370, %v24, %v159
    %v378 = vsel %vm370, %v25, %v161
    %v379 = vsel %vm370, %v26, %v163
    %v380 = vsel %vm370, %v27, %v165
    %v381 = vsel %vm370, %v28, %v167
    %v382 = vsel %vm370, %v29, %v169
    %v383 = vsel %vm370, %v30, %v171
    %v384 = vsel %vm370, %v31, %v173
    %v385 = vsel %vm370, %v32, %v175
    %v386 = vsel %vm370, %v33, %v177
    %v387 = vsel %vm370, %v34, %v179
    %v388 = vsel %vm370, %v35, %v181
    %v389 = vsel %vm370, %v36, %v183
    %v390 = vsel %vm370, %v37, %v185
    %v391 = vsel %vm370, %v38, %v187
    %v392 = vsel %vm370, %v39, %v189
    %v393 = vsel %vm370, %v40, %v191
    %v394 = vsel %vm370, %v41, %v193
    %v395 = vsel %vm370, %v42, %v195
    %v396 = vsel %vm370, %v43, %v197
    %v397 = vsel %vm370, %v44, %v199
    %v398 = vsel %vm370, %v45, %v201
    %v399 = vsel %vm370, %v46, %v203
    %v400 = vsel %vm370, %v47, %v205
    %v401 = vsel %vm370, %v48, %v207
    %v402 = vsel %vm370, %v49, %v209
    %vm403 = vcmask 64512
    %v404 = vsel %vm403, %v371, %v275
    %v405 = vsel %vm403, %v372, %v277
    %v406 = vsel %vm403, %v373, %v279
    %v407 = vsel %vm403, %v374, %v281
    %v408 = vsel %vm403, %v375, %v283
    %v409 = vsel %vm403, %v376, %v285
    %v410 = vsel %vm403, %v377, %v287
    %v411 = vsel %vm403, %v378, %v289
    %v412 = vsel %vm403, %v379, %v291
    %v413 = vsel %vm403, %v380, %v293
    %v414 = vsel %vm403, %v381, %v295
    %v415 = vsel %vm403, %v382, %v297
    %v416 = vsel %vm403, %v383, %v299
    %v417 = vsel %vm403, %v384, %v301
    %v418 = vsel %vm403, %v385, %v303
    %v419 = vsel %vm403, %v386, %v305
    %v420 = vsel %vm403, %v387, %v307
    %v421 = vsel %vm403, %v388, %v309
    %v422 = vsel %vm403, %v389, %v311
    %v423 = vsel %vm403, %v390, %v313
    %v424 = vsel %vm403, %v391, %v315
    %v425 = vsel %vm403, %v392, %v317
    %v426 = vsel %vm403, %v393, %v319
    %v427 = vsel %vm403, %v394, %v321
    %v428 = vsel %vm403, %v395, %v323
    %v429 = vsel %vm403, %v396, %v325
    %v430 = vsel %vm403, %v397, %v327
    %v431 = vsel %vm403, %v398, %v329
    %v432 = vsel %vm403, %v399, %v331
    %v433 = vsel %vm403, %v400, %v333
    %v434 = vsel %vm403, %v401, %v335
    %v435 = vsel %vm403, %v402, %v337
    %v436 = vld [vmem:[%s1] sm:$0xff]
    %v437 = vld [vmem:[%s1 + $0x8] sm:$0xf]
    %vm438 = vcmask 97280
    %v440 = vsel %vm438, %v404, 0
    %v443 = vsel %vm438, %v405, 0
    %v446 = vsel %vm438, %v406, 0
    %v449 = vsel %vm438, %v407, 0
    %v452 = vsel %vm438, %v408, 0
    %v455 = vsel %vm438, %v409, 0
    %v458 = vsel %vm438, %v410, 0
    %v461 = vsel %vm438, %v411, 0
    %v464 = vsel %vm438, %v412, 0
    %v467 = vsel %vm438, %v413, 0
    %v470 = vsel %vm438, %v414, 0
    %v473 = vsel %vm438, %v415, 0
    %v476 = vsel %vm438, %v416, 0
    %v479 = vsel %vm438, %v417, 0
    %v482 = vsel %vm438, %v418, 0
    %v485 = vsel %vm438, %v419, 0
    %v488 = vsel %vm438, %v420, 0
    %v491 = vsel %vm438, %v421, 0
    %v494 = vsel %vm438, %v422, 0
    %v497 = vsel %vm438, %v423, 0
    %v500 = vsel %vm438, %v424, 0
    %v503 = vsel %vm438, %v425, 0
    %v506 = vsel %vm438, %v426, 0
    %v509 = vsel %vm438, %v427, 0
    %v512 = vsel %vm438, %v428, 0
    %v515 = vsel %vm438, %v429, 0
    %v518 = vsel %vm438, %v430, 0
    %v521 = vsel %vm438, %v431, 0
    %v524 = vsel %vm438, %v432, 0
    %v527 = vsel %vm438, %v433, 0
    %v530 = vsel %vm438, %v434, 0
    %v533 = vsel %vm438, %v435, 0
    %vm535 = vcmask 1043456
    %v537 = vsel %vm535, %v437, 0
    %539 = vmatprep.subr.mxu0 0.0
    %540 = vmatpush1.msra.mxu0 0.0
    %541 = vmatprep.subr.mxu0 0.0
    %542 = vmatpush1.msra.mxu0 0.0
    %543 = vmatprep.subr.mxu0 0.0
    %544 = vmatpush1.msra.mxu0 0.0
    %545 = vmatprep.subr.mxu0 0.0
    %546 = vmatpush1.msra.mxu0 0.0
    %547 = vmatprep.subr.mxu0 0.0
    %548 = vmatpush1.msra.mxu0 0.0
    %549 = vmatprep.subr.mxu0 0.0
    %550 = vmatpush1.msra.mxu0 0.0
    %551 = vmatprep.subr.mxu0 0.0
    %552 = vmatpush1.msra.mxu0 0.0
    %553 = vmatprep.subr.mxu0 0.0
    %554 = vmatpush1.msra.mxu0 0.0
    %555 = vmatprep.subr.mxu0 0.0
    %556 = vmatpush1.msra.mxu0 0.0
    %557 = vmatprep.subr.mxu0 0.0
    %558 = vmatpush1.msra.mxu0 0.0
    %559 = vmatprep.subr.mxu0 0.0
    %560 = vmatpush1.msra.mxu0 0.0
    %561 = vmatprep.subr.mxu0 0.0
    %562 = vmatpush1.msra.mxu0 0.0
    %563 = vmatprep.subr.mxu0 0.0
    %564 = vmatpush1.msra.mxu0 0.0
    %565 = vmatprep.subr.mxu0 0.0
    %566 = vmatpush1.msra.mxu0 0.0
    %567 = vmatprep.subr.mxu0 0.0
    %568 = vmatpush1.msra.mxu0 %v537
    %569 = vmatprep.subr.mxu0 0.0
    %570 = vmatpush1.msra.mxu0 %v436
    %571 = vmatprep.subr.mxu0 0.0
    %572 = vmatpush2.msra.mxu0 0.0
    %573 = vmatprep.subr.mxu0 0.0
    %574 = vmatpush2.msra.mxu0 0.0
    %575 = vmatprep.subr.mxu0 0.0
    %576 = vmatpush2.msra.mxu0 0.0
    %577 = vmatprep.subr.mxu0 0.0
    %578 = vmatpush2.msra.mxu0 0.0
    %579 = vmatprep.subr.mxu0 0.0
    %580 = vmatpush2.msra.mxu0 0.0
    %581 = vmatprep.subr.mxu0 0.0
    %582 = vmatpush2.msra.mxu0 0.0
    %583 = vmatprep.subr.mxu0 0.0
    %584 = vmatpush2.msra.mxu0 0.0
    %585 = vmatprep.subr.mxu0 0.0
    %586 = vmatpush2.msra.mxu0 0.0
    %587 = vmatprep.subr.mxu0 0.0
    %588 = vmatpush2.msra.mxu0 0.0
    %589 = vmatprep.subr.mxu0 0.0
    %590 = vmatpush2.msra.mxu0 0.0
    %591 = vmatprep.subr.mxu0 0.0
    %592 = vmatpush2.msra.mxu0 0.0
    %593 = vmatprep.subr.mxu0 0.0
    %594 = vmatpush2.msra.mxu0 0.0
    %595 = vmatprep.subr.mxu0 0.0
    %596 = vmatpush2.msra.mxu0 0.0
    %597 = vmatprep.subr.mxu0 0.0
    %598 = vmatpush2.msra.mxu0 0.0
    %599 = vmatprep.subr.mxu0 0.0
    %600 = vmatpush2.msra.mxu0 0.0
    %601 = vmatprep.subr.mxu0 0.0
    %602 = vmatpush2.msra.mxu0 0.0
    %603 = vmatprep.mubr.f32.mxu0 0.0
    %604 = vmatmul.mubr.f32.gmra.mxu0 %v440
    %v605 = vpop.f32.mrf.mxu0
    %v606 = vadd.f32 0.0, %v605
    %v607 = vpop.f32.mrf.mxu0
    %608 = vmatprep.mubr.f32.mxu0 0.0
    %609 = vmatmul.mubr.f32.gmra.mxu0 %v443
    %v610 = vpop.f32.mrf.mxu0
    %v611 = vadd.f32 0.0, %v610
    %v612 = vpop.f32.mrf.mxu0
    %613 = vmatprep.mubr.f32.mxu0 0.0
    %614 = vmatmul.mubr.f32.gmra.mxu0 %v446
    %v615 = vpop.f32.mrf.mxu0
    %v616 = vadd.f32 0.0, %v615
    %v617 = vpop.f32.mrf.mxu0
    %618 = vmatprep.mubr.f32.mxu0 0.0
    %619 = vmatmul.mubr.f32.gmra.mxu0 %v449
    %v620 = vpop.f32.mrf.mxu0
    %v621 = vadd.f32 0.0, %v620
    %v622 = vpop.f32.mrf.mxu0
    %623 = vmatprep.mubr.f32.mxu0 0.0
    %624 = vmatmul.mubr.f32.gmra.mxu0 %v452
    %v625 = vpop.f32.mrf.mxu0
    %v626 = vadd.f32 0.0, %v625
    %v627 = vpop.f32.mrf.mxu0
    %628 = vmatprep.mubr.f32.mxu0 0.0
    %629 = vmatmul.mubr.f32.gmra.mxu0 %v455
    %v630 = vpop.f32.mrf.mxu0
    %v631 = vadd.f32 0.0, %v630
    %v632 = vpop.f32.mrf.mxu0
    %633 = vmatprep.mubr.f32.mxu0 0.0
    %634 = vmatmul.mubr.f32.gmra.mxu0 %v458
    %v635 = vpop.f32.mrf.mxu0
    %v636 = vadd.f32 0.0, %v635
    %v637 = vpop.f32.mrf.mxu0
    %638 = vmatprep.mubr.f32.mxu0 0.0
    %639 = vmatmul.mubr.f32.gmra.mxu0 %v461
    %v640 = vpop.f32.mrf.mxu0
    %v641 = vadd.f32 0.0, %v640
    %v642 = vpop.f32.mrf.mxu0
    %643 = vmatprep.mubr.f32.mxu0 0.0
    %644 = vmatmul.mubr.f32.gmra.mxu0 %v464
    %v645 = vpop.f32.mrf.mxu0
    %v646 = vadd.f32 0.0, %v645
    %v647 = vpop.f32.mrf.mxu0
    %648 = vmatprep.mubr.f32.mxu0 0.0
    %649 = vmatmul.mubr.f32.gmra.mxu0 %v467
    %v650 = vpop.f32.mrf.mxu0
    %v651 = vadd.f32 0.0, %v650
    %v652 = vpop.f32.mrf.mxu0
    %653 = vmatprep.mubr.f32.mxu0 0.0
    %654 = vmatmul.mubr.f32.gmra.mxu0 %v470
    %v655 = vpop.f32.mrf.mxu0
    %v656 = vadd.f32 0.0, %v655
    %v657 = vpop.f32.mrf.mxu0
    %658 = vmatprep.mubr.f32.mxu0 0.0
    %659 = vmatmul.mubr.f32.gmra.mxu0 %v473
    %v660 = vpop.f32.mrf.mxu0
    %v661 = vadd.f32 0.0, %v660
    %v662 = vpop.f32.mrf.mxu0
    %663 = vmatprep.mubr.f32.mxu0 0.0
    %664 = vmatmul.mubr.f32.gmra.mxu0 %v476
    %v665 = vpop.f32.mrf.mxu0
    %v666 = vadd.f32 0.0, %v665
    %v667 = vpop.f32.mrf.mxu0
    %668 = vmatprep.mubr.f32.mxu0 0.0
    %669 = vmatmul.mubr.f32.gmra.mxu0 %v479
    %v670 = vpop.f32.mrf.mxu0
    %v671 = vadd.f32 0.0, %v670
    %v672 = vpop.f32.mrf.mxu0
    %673 = vmatprep.mubr.f32.mxu0 0.0
    %674 = vmatmul.mubr.f32.gmra.mxu0 %v482
    %v675 = vpop.f32.mrf.mxu0
    %v676 = vadd.f32 0.0, %v675
    %v677 = vpop.f32.mrf.mxu0
    %678 = vmatprep.mubr.f32.mxu0 0.0
    %679 = vmatmul.mubr.f32.gmra.mxu0 %v485
    %v680 = vpop.f32.mrf.mxu0
    %v681 = vadd.f32 0.0, %v680
    %v682 = vpop.f32.mrf.mxu0
    %683 = vmatprep.mubr.f32.mxu0 0.0
    %684 = vmatmul.mubr.f32.gmra.mxu0 %v488
    %v685 = vpop.f32.mrf.mxu0
    %v686 = vadd.f32 0.0, %v685
    %v687 = vpop.f32.mrf.mxu0
    %688 = vmatprep.mubr.f32.mxu0 0.0
    %689 = vmatmul.mubr.f32.gmra.mxu0 %v491
    %v690 = vpop.f32.mrf.mxu0
    %v691 = vadd.f32 0.0, %v690
    %v692 = vpop.f32.mrf.mxu0
    %693 = vmatprep.mubr.f32.mxu0 0.0
    %694 = vmatmul.mubr.f32.gmra.mxu0 %v494
    %v695 = vpop.f32.mrf.mxu0
    %v696 = vadd.f32 0.0, %v695
    %v697 = vpop.f32.mrf.mxu0
    %698 = vmatprep.mubr.f32.mxu0 0.0
    %699 = vmatmul.mubr.f32.gmra.mxu0 %v497
    %v700 = vpop.f32.mrf.mxu0
    %v701 = vadd.f32 0.0, %v700
    %v702 = vpop.f32.mrf.mxu0
    %703 = vmatprep.mubr.f32.mxu0 0.0
    %704 = vmatmul.mubr.f32.gmra.mxu0 %v500
    %v705 = vpop.f32.mrf.mxu0
    %v706 = vadd.f32 0.0, %v705
    %v707 = vpop.f32.mrf.mxu0
    %708 = vmatprep.mubr.f32.mxu0 0.0
    %709 = vmatmul.mubr.f32.gmra.mxu0 %v503
    %v710 = vpop.f32.mrf.mxu0
    %v711 = vadd.f32 0.0, %v710
    %v712 = vpop.f32.mrf.mxu0
    %713 = vmatprep.mubr.f32.mxu0 0.0
    %714 = vmatmul.mubr.f32.gmra.mxu0 %v506
    %v715 = vpop.f32.mrf.mxu0
    %v716 = vadd.f32 0.0, %v715
    %v717 = vpop.f32.mrf.mxu0
    %718 = vmatprep.mubr.f32.mxu0 0.0
    %719 = vmatmul.mubr.f32.gmra.mxu0 %v509
    %v720 = vpop.f32.mrf.mxu0
    %v721 = vadd.f32 0.0, %v720
    %v722 = vpop.f32.mrf.mxu0
    %723 = vmatprep.mubr.f32.mxu0 0.0
    %724 = vmatmul.mubr.f32.gmra.mxu0 %v512
    %v725 = vpop.f32.mrf.mxu0
    %v726 = vadd.f32 0.0, %v725
    %v727 = vpop.f32.mrf.mxu0
    %728 = vmatprep.mubr.f32.mxu0 0.0
    %729 = vmatmul.mubr.f32.gmra.mxu0 %v515
    %v730 = vpop.f32.mrf.mxu0
    %v731 = vadd.f32 0.0, %v730
    %v732 = vpop.f32.mrf.mxu0
    %733 = vmatprep.mubr.f32.mxu0 0.0
    %734 = vmatmul.mubr.f32.gmra.mxu0 %v518
    %v735 = vpop.f32.mrf.mxu0
    %v736 = vadd.f32 0.0, %v735
    %v737 = vpop.f32.mrf.mxu0
    %738 = vmatprep.mubr.f32.mxu0 0.0
    %739 = vmatmul.mubr.f32.gmra.mxu0 %v521
    %v740 = vpop.f32.mrf.mxu0
    %v741 = vadd.f32 0.0, %v740
    %v742 = vpop.f32.mrf.mxu0
    %743 = vmatprep.mubr.f32.mxu0 0.0
    %744 = vmatmul.mubr.f32.gmra.mxu0 %v524
    %v745 = vpop.f32.mrf.mxu0
    %v746 = vadd.f32 0.0, %v745
    %v747 = vpop.f32.mrf.mxu0
    %748 = vmatprep.mubr.f32.mxu0 0.0
    %749 = vmatmul.mubr.f32.gmra.mxu0 %v527
    %v750 = vpop.f32.mrf.mxu0
    %v751 = vadd.f32 0.0, %v750
    %v752 = vpop.f32.mrf.mxu0
    %753 = vmatprep.mubr.f32.mxu0 0.0
    %754 = vmatmul.mubr.f32.gmra.mxu0 %v530
    %v755 = vpop.f32.mrf.mxu0
    %v756 = vadd.f32 0.0, %v755
    %v757 = vpop.f32.mrf.mxu0
    %758 = vmatprep.mubr.f32.mxu0 0.0
    %759 = vmatmul.mubr.f32.gmra.mxu0 %v533
    %v760 = vpop.f32.mrf.mxu0
    %v761 = vadd.f32 0.0, %v760
    %v762 = vpop.f32.mrf.mxu0
    %763 = vdwg.mxu0
    %v764 = vld [vmem:[%s2] sm:$0x1]
    %v766 = vlaneseq
    %v767 = vshrl.u32 %v766, 7
    %v768 = vsub.s32 0, %v767
    %v769 = vrot.slane %v764, %v768
    %v771 = vmul.f32 %v606, %v769
    %v772 = vmul.f32 %v611, %v769
    %v773 = vmul.f32 %v616, %v769
    %v774 = vmul.f32 %v621, %v769
    %v775 = vmul.f32 %v626, %v769
    %v776 = vmul.f32 %v631, %v769
    %v777 = vmul.f32 %v636, %v769
    %v778 = vmul.f32 %v641, %v769
    %v779 = vmul.f32 %v646, %v769
    %v780 = vmul.f32 %v651, %v769
    %v781 = vmul.f32 %v656, %v769
    %v782 = vmul.f32 %v661, %v769
    %v783 = vmul.f32 %v666, %v769
    %v784 = vmul.f32 %v671, %v769
    %v785 = vmul.f32 %v676, %v769
    %v786 = vmul.f32 %v681, %v769
    %v787 = vmul.f32 %v686, %v769
    %v788 = vmul.f32 %v691, %v769
    %v789 = vmul.f32 %v696, %v769
    %v790 = vmul.f32 %v701, %v769
    %v791 = vmul.f32 %v706, %v769
    %v792 = vmul.f32 %v711, %v769
    %v793 = vmul.f32 %v716, %v769
    %v794 = vmul.f32 %v721, %v769
    %v795 = vmul.f32 %v726, %v769
    %v796 = vmul.f32 %v731, %v769
    %v797 = vmul.f32 %v736, %v769
    %v798 = vmul.f32 %v741, %v769
    %v799 = vmul.f32 %v746, %v769
    %v800 = vmul.f32 %v751, %v769
    %v801 = vmul.f32 %v756, %v769
    %v802 = vmul.f32 %v761, %v769
    %v803 = vld [vmem:[%s3] sm:$0x1]
    %v805 = vlaneseq
    %v806 = vshrl.u32 %v805, 7
    %v807 = vsub.s32 0, %v806
    %v808 = vrot.slane %v803, %v807
    %v810 = vadd.f32 %v771, %v808
    %v811 = vadd.f32 %v772, %v808
    %v812 = vadd.f32 %v773, %v808
    %v813 = vadd.f32 %v774, %v808
    %v814 = vadd.f32 %v775, %v808
    %v815 = vadd.f32 %v776, %v808
    %v816 = vadd.f32 %v777, %v808
    %v817 = vadd.f32 %v778, %v808
    %v818 = vadd.f32 %v779, %v808
    %v819 = vadd.f32 %v780, %v808
    %v820 = vadd.f32 %v781, %v808
    %v821 = vadd.f32 %v782, %v808
    %v822 = vadd.f32 %v783, %v808
    %v823 = vadd.f32 %v784, %v808
    %v824 = vadd.f32 %v785, %v808
    %v825 = vadd.f32 %v786, %v808
    %v826 = vadd.f32 %v787, %v808
    %v827 = vadd.f32 %v788, %v808
    %v828 = vadd.f32 %v789, %v808
    %v829 = vadd.f32 %v790, %v808
    %v830 = vadd.f32 %v791, %v808
    %v831 = vadd.f32 %v792, %v808
    %v832 = vadd.f32 %v793, %v808
    %v833 = vadd.f32 %v794, %v808
    %v834 = vadd.f32 %v795, %v808
    %v835 = vadd.f32 %v796, %v808
    %v836 = vadd.f32 %v797, %v808
    %v837 = vadd.f32 %v798, %v808
    %v838 = vadd.f32 %v799, %v808
    %v839 = vadd.f32 %v800, %v808
    %v840 = vadd.f32 %v801, %v808
    %v841 = vadd.f32 %v802, %v808
    %v842 = vxor.u32 %v810, 2147483648
    %v843 = vxor.u32 %v811, 2147483648
    %v844 = vxor.u32 %v812, 2147483648
    %v845 = vxor.u32 %v813, 2147483648
    %v846 = vxor.u32 %v814, 2147483648
    %v847 = vxor.u32 %v815, 2147483648
    %v848 = vxor.u32 %v816, 2147483648
    %v849 = vxor.u32 %v817, 2147483648
    %v850 = vxor.u32 %v818, 2147483648
    %v851 = vxor.u32 %v819, 2147483648
    %v852 = vxor.u32 %v820, 2147483648
    %v853 = vxor.u32 %v821, 2147483648
    %v854 = vxor.u32 %v822, 2147483648
    %v855 = vxor.u32 %v823, 2147483648
    %v856 = vxor.u32 %v824, 2147483648
    %v857 = vxor.u32 %v825, 2147483648
    %v858 = vxor.u32 %v826, 2147483648
    %v859 = vxor.u32 %v827, 2147483648
    %v860 = vxor.u32 %v828, 2147483648
    %v861 = vxor.u32 %v829, 2147483648
    %v862 = vxor.u32 %v830, 2147483648
    %v863 = vxor.u32 %v831, 2147483648
    %v864 = vxor.u32 %v832, 2147483648
    %v865 = vxor.u32 %v833, 2147483648
    %v866 = vxor.u32 %v834, 2147483648
    %v867 = vxor.u32 %v835, 2147483648
    %v868 = vxor.u32 %v836, 2147483648
    %v869 = vxor.u32 %v837, 2147483648
    %v870 = vxor.u32 %v838, 2147483648
    %v871 = vxor.u32 %v839, 2147483648
    %v872 = vxor.u32 %v840, 2147483648
    %v873 = vxor.u32 %v841, 2147483648
    %v874 = vmul.f32 %v842, 1.442695
    %v875 = vpow.pop %v874
    %v876 = vmul.f32 %v843, 1.442695
    %v877 = vpow.pop %v876
    %v878 = vmul.f32 %v844, 1.442695
    %v879 = vpow.pop %v878
    %v880 = vmul.f32 %v845, 1.442695
    %v881 = vpow.pop %v880
    %v882 = vmul.f32 %v846, 1.442695
    %v883 = vpow.pop %v882
    %v884 = vmul.f32 %v847, 1.442695
    %v885 = vpow.pop %v884
    %v886 = vmul.f32 %v848, 1.442695
    %v887 = vpow.pop %v886
    %v888 = vmul.f32 %v849, 1.442695
    %v889 = vpow.pop %v888
    %v890 = vmul.f32 %v850, 1.442695
    %v891 = vpow.pop %v890
    %v892 = vmul.f32 %v851, 1.442695
    %v893 = vpow.pop %v892
    %v894 = vmul.f32 %v852, 1.442695
    %v895 = vpow.pop %v894
    %v896 = vmul.f32 %v853, 1.442695
    %v897 = vpow.pop %v896
    %v898 = vmul.f32 %v854, 1.442695
    %v899 = vpow.pop %v898
    %v900 = vmul.f32 %v855, 1.442695
    %v901 = vpow.pop %v900
    %v902 = vmul.f32 %v856, 1.442695
    %v903 = vpow.pop %v902
    %v904 = vmul.f32 %v857, 1.442695
    %v905 = vpow.pop %v904
    %v906 = vmul.f32 %v858, 1.442695
    %v907 = vpow.pop %v906
    %v908 = vmul.f32 %v859, 1.442695
    %v909 = vpow.pop %v908
    %v910 = vmul.f32 %v860, 1.442695
    %v911 = vpow.pop %v910
    %v912 = vmul.f32 %v861, 1.442695
    %v913 = vpow.pop %v912
    %v914 = vmul.f32 %v862, 1.442695
    %v915 = vpow.pop %v914
    %v916 = vmul.f32 %v863, 1.442695
    %v917 = vpow.pop %v916
    %v918 = vmul.f32 %v864, 1.442695
    %v919 = vpow.pop %v918
    %v920 = vmul.f32 %v865, 1.442695
    %v921 = vpow.pop %v920
    %v922 = vmul.f32 %v866, 1.442695
    %v923 = vpow.pop %v922
    %v924 = vmul.f32 %v867, 1.442695
    %v925 = vpow.pop %v924
    %v926 = vmul.f32 %v868, 1.442695
    %v927 = vpow.pop %v926
    %v928 = vmul.f32 %v869, 1.442695
    %v929 = vpow.pop %v928
    %v930 = vmul.f32 %v870, 1.442695
    %v931 = vpow.pop %v930
    %v932 = vmul.f32 %v871, 1.442695
    %v933 = vpow.pop %v932
    %v934 = vmul.f32 %v872, 1.442695
    %v935 = vpow.pop %v934
    %v936 = vmul.f32 %v873, 1.442695
    %v937 = vpow.pop %v936
    %v938 = vadd.f32 %v875, 1.0
    %v939 = vadd.f32 %v877, 1.0
    %v940 = vadd.f32 %v879, 1.0
    %v941 = vadd.f32 %v881, 1.0
    %v942 = vadd.f32 %v883, 1.0
    %v943 = vadd.f32 %v885, 1.0
    %v944 = vadd.f32 %v887, 1.0
    %v945 = vadd.f32 %v889, 1.0
    %v946 = vadd.f32 %v891, 1.0
    %v947 = vadd.f32 %v893, 1.0
    %v948 = vadd.f32 %v895, 1.0
    %v949 = vadd.f32 %v897, 1.0
    %v950 = vadd.f32 %v899, 1.0
    %v951 = vadd.f32 %v901, 1.0
    %v952 = vadd.f32 %v903, 1.0
    %v953 = vadd.f32 %v905, 1.0
    %v954 = vadd.f32 %v907, 1.0
    %v955 = vadd.f32 %v909, 1.0
    %v956 = vadd.f32 %v911, 1.0
    %v957 = vadd.f32 %v913, 1.0
    %v958 = vadd.f32 %v915, 1.0
    %v959 = vadd.f32 %v917, 1.0
    %v960 = vadd.f32 %v919, 1.0
    %v961 = vadd.f32 %v921, 1.0
    %v962 = vadd.f32 %v923, 1.0
    %v963 = vadd.f32 %v925, 1.0
    %v964 = vadd.f32 %v927, 1.0
    %v965 = vadd.f32 %v929, 1.0
    %v966 = vadd.f32 %v931, 1.0
    %v967 = vadd.f32 %v933, 1.0
    %v968 = vadd.f32 %v935, 1.0
    %v969 = vadd.f32 %v937, 1.0
    %v970 = vrcp.pop %v938
    %v971 = vmul.f32 1.0, %v970
    %v972 = vrcp.pop %v939
    %v973 = vmul.f32 1.0, %v972
    %v974 = vrcp.pop %v940
    %v975 = vmul.f32 1.0, %v974
    %v976 = vrcp.pop %v941
    %v977 = vmul.f32 1.0, %v976
    %v978 = vrcp.pop %v942
    %v979 = vmul.f32 1.0, %v978
    %v980 = vrcp.pop %v943
    %v981 = vmul.f32 1.0, %v980
    %v982 = vrcp.pop %v944
    %v983 = vmul.f32 1.0, %v982
    %v984 = vrcp.pop %v945
    %v985 = vmul.f32 1.0, %v984
    %v986 = vrcp.pop %v946
    %v987 = vmul.f32 1.0, %v986
    %v988 = vrcp.pop %v947
    %v989 = vmul.f32 1.0, %v988
    %v990 = vrcp.pop %v948
    %v991 = vmul.f32 1.0, %v990
    %v992 = vrcp.pop %v949
    %v993 = vmul.f32 1.0, %v992
    %v994 = vrcp.pop %v950
    %v995 = vmul.f32 1.0, %v994
    %v996 = vrcp.pop %v951
    %v997 = vmul.f32 1.0, %v996
    %v998 = vrcp.pop %v952
    %v999 = vmul.f32 1.0, %v998
    %v1000 = vrcp.pop %v953
    %v1001 = vmul.f32 1.0, %v1000
    %v1002 = vrcp.pop %v954
    %v1003 = vmul.f32 1.0, %v1002
    %v1004 = vrcp.pop %v955
    %v1005 = vmul.f32 1.0, %v1004
    %v1006 = vrcp.pop %v956
    %v1007 = vmul.f32 1.0, %v1006
    %v1008 = vrcp.pop %v957
    %v1009 = vmul.f32 1.0, %v1008
    %v1010 = vrcp.pop %v958
    %v1011 = vmul.f32 1.0, %v1010
    %v1012 = vrcp.pop %v959
    %v1013 = vmul.f32 1.0, %v1012
    %v1014 = vrcp.pop %v960
    %v1015 = vmul.f32 1.0, %v1014
    %v1016 = vrcp.pop %v961
    %v1017 = vmul.f32 1.0, %v1016
    %v1018 = vrcp.pop %v962
    %v1019 = vmul.f32 1.0, %v1018
    %v1020 = vrcp.pop %v963
    %v1021 = vmul.f32 1.0, %v1020
    %v1022 = vrcp.pop %v964
    %v1023 = vmul.f32 1.0, %v1022
    %v1024 = vrcp.pop %v965
    %v1025 = vmul.f32 1.0, %v1024
    %v1026 = vrcp.pop %v966
    %v1027 = vmul.f32 1.0, %v1026
    %v1028 = vrcp.pop %v967
    %v1029 = vmul.f32 1.0, %v1028
    %v1030 = vrcp.pop %v968
    %v1031 = vmul.f32 1.0, %v1030
    %v1032 = vrcp.pop %v969
    %v1033 = vmul.f32 1.0, %v1032
    %v1034 = vmul.f32 %v810, %v971
    %v1035 = vmul.f32 %v811, %v973
    %v1036 = vmul.f32 %v812, %v975
    %v1037 = vmul.f32 %v813, %v977
    %v1038 = vmul.f32 %v814, %v979
    %v1039 = vmul.f32 %v815, %v981
    %v1040 = vmul.f32 %v816, %v983
    %v1041 = vmul.f32 %v817, %v985
    %v1042 = vmul.f32 %v818, %v987
    %v1043 = vmul.f32 %v819, %v989
    %v1044 = vmul.f32 %v820, %v991
    %v1045 = vmul.f32 %v821, %v993
    %v1046 = vmul.f32 %v822, %v995
    %v1047 = vmul.f32 %v823, %v997
    %v1048 = vmul.f32 %v824, %v999
    %v1049 = vmul.f32 %v825, %v1001
    %v1050 = vmul.f32 %v826, %v1003
    %v1051 = vmul.f32 %v827, %v1005
    %v1052 = vmul.f32 %v828, %v1007
    %v1053 = vmul.f32 %v829, %v1009
    %v1054 = vmul.f32 %v830, %v1011
    %v1055 = vmul.f32 %v831, %v1013
    %v1056 = vmul.f32 %v832, %v1015
    %v1057 = vmul.f32 %v833, %v1017
    %v1058 = vmul.f32 %v834, %v1019
    %v1059 = vmul.f32 %v835, %v1021
    %v1060 = vmul.f32 %v836, %v1023
    %v1061 = vmul.f32 %v837, %v1025
    %v1062 = vmul.f32 %v838, %v1027
    %v1063 = vmul.f32 %v839, %v1029
    %v1064 = vmul.f32 %v840, %v1031
    %v1065 = vmul.f32 %v841, %v1033
    %v1098 = vcombine.high %v1034, %v1034
    %v1100 = vunpack.c.l.s4 1983009808
    %v1101 = vunpack.c.0.s8 %v1100
    %v1102 = vlaneseq
    %v1103 = vshrl.u32 %v1102, 7
    %v1104 = vsub.s32 %v1101, %v1103
    %v1105 = vrot.slane %v1034, %v1104
    %v1107 = vunpack.c.l.s4 1983009808
    %v1108 = vunpack.c.0.s8 %v1107
    %v1109 = vlaneseq
    %v1110 = vshrl.u32 %v1109, 7
    %v1111 = vsub.s32 %v1108, %v1110
    %v1112 = vrot.slane %v1098, %v1111
    %v1113 = vcombine.high %v1105, %v1105
    %v1114 = vcombine.high %v1112, %v1112
    %v1115 = vcombine.high %v1035, %v1035
    %v1117 = vunpack.c.l.s4 1983009808
    %v1118 = vunpack.c.0.s8 %v1117
    %v1119 = vlaneseq
    %v1120 = vshrl.u32 %v1119, 7
    %v1121 = vsub.s32 %v1118, %v1120
    %v1122 = vrot.slane %v1035, %v1121
    %v1124 = vunpack.c.l.s4 1983009808
    %v1125 = vunpack.c.0.s8 %v1124
    %v1126 = vlaneseq
    %v1127 = vshrl.u32 %v1126, 7
    %v1128 = vsub.s32 %v1125, %v1127
    %v1129 = vrot.slane %v1115, %v1128
    %v1130 = vcombine.high %v1122, %v1122
    %v1131 = vcombine.high %v1129, %v1129
    %v1132 = vcombine.high %v1036, %v1036
    %v1134 = vunpack.c.l.s4 1983009808
    %v1135 = vunpack.c.0.s8 %v1134
    %v1136 = vlaneseq
    %v1137 = vshrl.u32 %v1136, 7
    %v1138 = vsub.s32 %v1135, %v1137
    %v1139 = vrot.slane %v1036, %v1138
    %v1141 = vunpack.c.l.s4 1983009808
    %v1142 = vunpack.c.0.s8 %v1141
    %v1143 = vlaneseq
    %v1144 = vshrl.u32 %v1143, 7
    %v1145 = vsub.s32 %v1142, %v1144
    %v1146 = vrot.slane %v1132, %v1145
    %v1147 = vcombine.high %v1139, %v1139
    %v1148 = vcombine.high %v1146, %v1146
    %v1149 = vcombine.high %v1037, %v1037
    %v1151 = vunpack.c.l.s4 1983009808
    %v1152 = vunpack.c.0.s8 %v1151
    %v1153 = vlaneseq
    %v1154 = vshrl.u32 %v1153, 7
    %v1155 = vsub.s32 %v1152, %v1154
    %v1156 = vrot.slane %v1037, %v1155
    %v1158 = vunpack.c.l.s4 1983009808
    %v1159 = vunpack.c.0.s8 %v1158
    %v1160 = vlaneseq
    %v1161 = vshrl.u32 %v1160, 7
    %v1162 = vsub.s32 %v1159, %v1161
    %v1163 = vrot.slane %v1149, %v1162
    %v1164 = vcombine.high %v1156, %v1156
    %v1165 = vcombine.high %v1163, %v1163
    %v1166 = vcombine.high %v1038, %v1038
    %v1168 = vunpack.c.l.s4 1983009808
    %v1169 = vunpack.c.0.s8 %v1168
    %v1170 = vlaneseq
    %v1171 = vshrl.u32 %v1170, 7
    %v1172 = vsub.s32 %v1169, %v1171
    %v1173 = vrot.slane %v1038, %v1172
    %v1175 = vunpack.c.l.s4 1983009808
    %v1176 = vunpack.c.0.s8 %v1175
    %v1177 = vlaneseq
    %v1178 = vshrl.u32 %v1177, 7
    %v1179 = vsub.s32 %v1176, %v1178
    %v1180 = vrot.slane %v1166, %v1179
    %v1181 = vcombine.high %v1173, %v1173
    %v1182 = vcombine.high %v1180, %v1180
    %v1183 = vcombine.high %v1039, %v1039
    %v1185 = vunpack.c.l.s4 1983009808
    %v1186 = vunpack.c.0.s8 %v1185
    %v1187 = vlaneseq
    %v1188 = vshrl.u32 %v1187, 7
    %v1189 = vsub.s32 %v1186, %v1188
    %v1190 = vrot.slane %v1039, %v1189
    %v1192 = vunpack.c.l.s4 1983009808
    %v1193 = vunpack.c.0.s8 %v1192
    %v1194 = vlaneseq
    %v1195 = vshrl.u32 %v1194, 7
    %v1196 = vsub.s32 %v1193, %v1195
    %v1197 = vrot.slane %v1183, %v1196
    %v1198 = vcombine.high %v1190, %v1190
    %v1199 = vcombine.high %v1197, %v1197
    %v1200 = vcombine.high %v1040, %v1040
    %v1202 = vunpack.c.l.s4 1983009808
    %v1203 = vunpack.c.0.s8 %v1202
    %v1204 = vlaneseq
    %v1205 = vshrl.u32 %v1204, 7
    %v1206 = vsub.s32 %v1203, %v1205
    %v1207 = vrot.slane %v1040, %v1206
    %v1209 = vunpack.c.l.s4 1983009808
    %v1210 = vunpack.c.0.s8 %v1209
    %v1211 = vlaneseq
    %v1212 = vshrl.u32 %v1211, 7
    %v1213 = vsub.s32 %v1210, %v1212
    %v1214 = vrot.slane %v1200, %v1213
    %v1215 = vcombine.high %v1207, %v1207
    %v1216 = vcombine.high %v1214, %v1214
    %v1217 = vcombine.high %v1041, %v1041
    %v1219 = vunpack.c.l.s4 1983009808
    %v1220 = vunpack.c.0.s8 %v1219
    %v1221 = vlaneseq
    %v1222 = vshrl.u32 %v1221, 7
    %v1223 = vsub.s32 %v1220, %v1222
    %v1224 = vrot.slane %v1041, %v1223
    %v1226 = vunpack.c.l.s4 1983009808
    %v1227 = vunpack.c.0.s8 %v1226
    %v1228 = vlaneseq
    %v1229 = vshrl.u32 %v1228, 7
    %v1230 = vsub.s32 %v1227, %v1229
    %v1231 = vrot.slane %v1217, %v1230
    %v1232 = vcombine.high %v1224, %v1224
    %v1233 = vcombine.high %v1231, %v1231
    %v1234 = vcombine.high %v1042, %v1042
    %v1236 = vunpack.c.l.s4 1983009808
    %v1237 = vunpack.c.0.s8 %v1236
    %v1238 = vlaneseq
    %v1239 = vshrl.u32 %v1238, 7
    %v1240 = vsub.s32 %v1237, %v1239
    %v1241 = vrot.slane %v1042, %v1240
    %v1243 = vunpack.c.l.s4 1983009808
    %v1244 = vunpack.c.0.s8 %v1243
    %v1245 = vlaneseq
    %v1246 = vshrl.u32 %v1245, 7
    %v1247 = vsub.s32 %v1244, %v1246
    %v1248 = vrot.slane %v1234, %v1247
    %v1249 = vcombine.high %v1241, %v1241
    %v1250 = vcombine.high %v1248, %v1248
    %v1251 = vcombine.high %v1043, %v1043
    %v1253 = vunpack.c.l.s4 1983009808
    %v1254 = vunpack.c.0.s8 %v1253
    %v1255 = vlaneseq
    %v1256 = vshrl.u32 %v1255, 7
    %v1257 = vsub.s32 %v1254, %v1256
    %v1258 = vrot.slane %v1043, %v1257
    %v1260 = vunpack.c.l.s4 1983009808
    %v1261 = vunpack.c.0.s8 %v1260
    %v1262 = vlaneseq
    %v1263 = vshrl.u32 %v1262, 7
    %v1264 = vsub.s32 %v1261, %v1263
    %v1265 = vrot.slane %v1251, %v1264
    %v1266 = vcombine.high %v1258, %v1258
    %v1267 = vcombine.high %v1265, %v1265
    %v1268 = vcombine.high %v1044, %v1044
    %v1270 = vunpack.c.l.s4 1983009808
    %v1271 = vunpack.c.0.s8 %v1270
    %v1272 = vlaneseq
    %v1273 = vshrl.u32 %v1272, 7
    %v1274 = vsub.s32 %v1271, %v1273
    %v1275 = vrot.slane %v1044, %v1274
    %v1277 = vunpack.c.l.s4 1983009808
    %v1278 = vunpack.c.0.s8 %v1277
    %v1279 = vlaneseq
    %v1280 = vshrl.u32 %v1279, 7
    %v1281 = vsub.s32 %v1278, %v1280
    %v1282 = vrot.slane %v1268, %v1281
    %v1283 = vcombine.high %v1275, %v1275
    %v1284 = vcombine.high %v1282, %v1282
    %v1285 = vcombine.high %v1045, %v1045
    %v1287 = vunpack.c.l.s4 1983009808
    %v1288 = vunpack.c.0.s8 %v1287
    %v1289 = vlaneseq
    %v1290 = vshrl.u32 %v1289, 7
    %v1291 = vsub.s32 %v1288, %v1290
    %v1292 = vrot.slane %v1045, %v1291
    %v1294 = vunpack.c.l.s4 1983009808
    %v1295 = vunpack.c.0.s8 %v1294
    %v1296 = vlaneseq
    %v1297 = vshrl.u32 %v1296, 7
    %v1298 = vsub.s32 %v1295, %v1297
    %v1299 = vrot.slane %v1285, %v1298
    %v1300 = vcombine.high %v1292, %v1292
    %v1301 = vcombine.high %v1299, %v1299
    %v1302 = vcombine.high %v1046, %v1046
    %v1304 = vunpack.c.l.s4 1983009808
    %v1305 = vunpack.c.0.s8 %v1304
    %v1306 = vlaneseq
    %v1307 = vshrl.u32 %v1306, 7
    %v1308 = vsub.s32 %v1305, %v1307
    %v1309 = vrot.slane %v1046, %v1308
    %v1311 = vunpack.c.l.s4 1983009808
    %v1312 = vunpack.c.0.s8 %v1311
    %v1313 = vlaneseq
    %v1314 = vshrl.u32 %v1313, 7
    %v1315 = vsub.s32 %v1312, %v1314
    %v1316 = vrot.slane %v1302, %v1315
    %v1317 = vcombine.high %v1309, %v1309
    %v1318 = vcombine.high %v1316, %v1316
    %v1319 = vcombine.high %v1047, %v1047
    %v1321 = vunpack.c.l.s4 1983009808
    %v1322 = vunpack.c.0.s8 %v1321
    %v1323 = vlaneseq
    %v1324 = vshrl.u32 %v1323, 7
    %v1325 = vsub.s32 %v1322, %v1324
    %v1326 = vrot.slane %v1047, %v1325
    %v1328 = vunpack.c.l.s4 1983009808
    %v1329 = vunpack.c.0.s8 %v1328
    %v1330 = vlaneseq
    %v1331 = vshrl.u32 %v1330, 7
    %v1332 = vsub.s32 %v1329, %v1331
    %v1333 = vrot.slane %v1319, %v1332
    %v1334 = vcombine.high %v1326, %v1326
    %v1335 = vcombine.high %v1333, %v1333
    %v1336 = vcombine.high %v1048, %v1048
    %v1338 = vunpack.c.l.s4 1983009808
    %v1339 = vunpack.c.0.s8 %v1338
    %v1340 = vlaneseq
    %v1341 = vshrl.u32 %v1340, 7
    %v1342 = vsub.s32 %v1339, %v1341
    %v1343 = vrot.slane %v1048, %v1342
    %v1345 = vunpack.c.l.s4 1983009808
    %v1346 = vunpack.c.0.s8 %v1345
    %v1347 = vlaneseq
    %v1348 = vshrl.u32 %v1347, 7
    %v1349 = vsub.s32 %v1346, %v1348
    %v1350 = vrot.slane %v1336, %v1349
    %v1351 = vcombine.high %v1343, %v1343
    %v1352 = vcombine.high %v1350, %v1350
    %v1353 = vcombine.high %v1049, %v1049
    %v1355 = vunpack.c.l.s4 1983009808
    %v1356 = vunpack.c.0.s8 %v1355
    %v1357 = vlaneseq
    %v1358 = vshrl.u32 %v1357, 7
    %v1359 = vsub.s32 %v1356, %v1358
    %v1360 = vrot.slane %v1049, %v1359
    %v1362 = vunpack.c.l.s4 1983009808
    %v1363 = vunpack.c.0.s8 %v1362
    %v1364 = vlaneseq
    %v1365 = vshrl.u32 %v1364, 7
    %v1366 = vsub.s32 %v1363, %v1365
    %v1367 = vrot.slane %v1353, %v1366
    %v1368 = vcombine.high %v1360, %v1360
    %v1369 = vcombine.high %v1367, %v1367
    %v1370 = vcombine.high %v1050, %v1050
    %v1372 = vunpack.c.l.s4 1983009808
    %v1373 = vunpack.c.0.s8 %v1372
    %v1374 = vlaneseq
    %v1375 = vshrl.u32 %v1374, 7
    %v1376 = vsub.s32 %v1373, %v1375
    %v1377 = vrot.slane %v1050, %v1376
    %v1379 = vunpack.c.l.s4 1983009808
    %v1380 = vunpack.c.0.s8 %v1379
    %v1381 = vlaneseq
    %v1382 = vshrl.u32 %v1381, 7
    %v1383 = vsub.s32 %v1380, %v1382
    %v1384 = vrot.slane %v1370, %v1383
    %v1385 = vcombine.high %v1377, %v1377
    %v1386 = vcombine.high %v1384, %v1384
    %v1387 = vcombine.high %v1051, %v1051
    %v1389 = vunpack.c.l.s4 1983009808
    %v1390 = vunpack.c.0.s8 %v1389
    %v1391 = vlaneseq
    %v1392 = vshrl.u32 %v1391, 7
    %v1393 = vsub.s32 %v1390, %v1392
    %v1394 = vrot.slane %v1051, %v1393
    %v1396 = vunpack.c.l.s4 1983009808
    %v1397 = vunpack.c.0.s8 %v1396
    %v1398 = vlaneseq
    %v1399 = vshrl.u32 %v1398, 7
    %v1400 = vsub.s32 %v1397, %v1399
    %v1401 = vrot.slane %v1387, %v1400
    %v1402 = vcombine.high %v1394, %v1394
    %v1403 = vcombine.high %v1401, %v1401
    %v1404 = vcombine.high %v1052, %v1052
    %v1406 = vunpack.c.l.s4 1983009808
    %v1407 = vunpack.c.0.s8 %v1406
    %v1408 = vlaneseq
    %v1409 = vshrl.u32 %v1408, 7
    %v1410 = vsub.s32 %v1407, %v1409
    %v1411 = vrot.slane %v1052, %v1410
    %v1413 = vunpack.c.l.s4 1983009808
    %v1414 = vunpack.c.0.s8 %v1413
    %v1415 = vlaneseq
    %v1416 = vshrl.u32 %v1415, 7
    %v1417 = vsub.s32 %v1414, %v1416
    %v1418 = vrot.slane %v1404, %v1417
    %v1419 = vcombine.high %v1411, %v1411
    %v1420 = vcombine.high %v1418, %v1418
    %v1421 = vcombine.high %v1053, %v1053
    %v1423 = vunpack.c.l.s4 1983009808
    %v1424 = vunpack.c.0.s8 %v1423
    %v1425 = vlaneseq
    %v1426 = vshrl.u32 %v1425, 7
    %v1427 = vsub.s32 %v1424, %v1426
    %v1428 = vrot.slane %v1053, %v1427
    %v1430 = vunpack.c.l.s4 1983009808
    %v1431 = vunpack.c.0.s8 %v1430
    %v1432 = vlaneseq
    %v1433 = vshrl.u32 %v1432, 7
    %v1434 = vsub.s32 %v1431, %v1433
    %v1435 = vrot.slane %v1421, %v1434
    %v1436 = vcombine.high %v1428, %v1428
    %v1437 = vcombine.high %v1435, %v1435
    %v1438 = vcombine.high %v1054, %v1054
    %v1440 = vunpack.c.l.s4 1983009808
    %v1441 = vunpack.c.0.s8 %v1440
    %v1442 = vlaneseq
    %v1443 = vshrl.u32 %v1442, 7
    %v1444 = vsub.s32 %v1441, %v1443
    %v1445 = vrot.slane %v1054, %v1444
    %v1447 = vunpack.c.l.s4 1983009808
    %v1448 = vunpack.c.0.s8 %v1447
    %v1449 = vlaneseq
    %v1450 = vshrl.u32 %v1449, 7
    %v1451 = vsub.s32 %v1448, %v1450
    %v1452 = vrot.slane %v1438, %v1451
    %v1453 = vcombine.high %v1445, %v1445
    %v1454 = vcombine.high %v1452, %v1452
    %v1455 = vcombine.high %v1055, %v1055
    %v1457 = vunpack.c.l.s4 1983009808
    %v1458 = vunpack.c.0.s8 %v1457
    %v1459 = vlaneseq
    %v1460 = vshrl.u32 %v1459, 7
    %v1461 = vsub.s32 %v1458, %v1460
    %v1462 = vrot.slane %v1055, %v1461
    %v1464 = vunpack.c.l.s4 1983009808
    %v1465 = vunpack.c.0.s8 %v1464
    %v1466 = vlaneseq
    %v1467 = vshrl.u32 %v1466, 7
    %v1468 = vsub.s32 %v1465, %v1467
    %v1469 = vrot.slane %v1455, %v1468
    %v1470 = vcombine.high %v1462, %v1462
    %v1471 = vcombine.high %v1469, %v1469
    %v1472 = vcombine.high %v1056, %v1056
    %v1474 = vunpack.c.l.s4 1983009808
    %v1475 = vunpack.c.0.s8 %v1474
    %v1476 = vlaneseq
    %v1477 = vshrl.u32 %v1476, 7
    %v1478 = vsub.s32 %v1475, %v1477
    %v1479 = vrot.slane %v1056, %v1478
    %v1481 = vunpack.c.l.s4 1983009808
    %v1482 = vunpack.c.0.s8 %v1481
    %v1483 = vlaneseq
    %v1484 = vshrl.u32 %v1483, 7
    %v1485 = vsub.s32 %v1482, %v1484
    %v1486 = vrot.slane %v1472, %v1485
    %v1487 = vcombine.high %v1479, %v1479
    %v1488 = vcombine.high %v1486, %v1486
    %v1489 = vcombine.high %v1057, %v1057
    %v1491 = vunpack.c.l.s4 1983009808
    %v1492 = vunpack.c.0.s8 %v1491
    %v1493 = vlaneseq
    %v1494 = vshrl.u32 %v1493, 7
    %v1495 = vsub.s32 %v1492, %v1494
    %v1496 = vrot.slane %v1057, %v1495
    %v1498 = vunpack.c.l.s4 1983009808
    %v1499 = vunpack.c.0.s8 %v1498
    %v1500 = vlaneseq
    %v1501 = vshrl.u32 %v1500, 7
    %v1502 = vsub.s32 %v1499, %v1501
    %v1503 = vrot.slane %v1489, %v1502
    %v1504 = vcombine.high %v1496, %v1496
    %v1505 = vcombine.high %v1503, %v1503
    %v1506 = vcombine.high %v1058, %v1058
    %v1508 = vunpack.c.l.s4 1983009808
    %v1509 = vunpack.c.0.s8 %v1508
    %v1510 = vlaneseq
    %v1511 = vshrl.u32 %v1510, 7
    %v1512 = vsub.s32 %v1509, %v1511
    %v1513 = vrot.slane %v1058, %v1512
    %v1515 = vunpack.c.l.s4 1983009808
    %v1516 = vunpack.c.0.s8 %v1515
    %v1517 = vlaneseq
    %v1518 = vshrl.u32 %v1517, 7
    %v1519 = vsub.s32 %v1516, %v1518
    %v1520 = vrot.slane %v1506, %v1519
    %v1521 = vcombine.high %v1513, %v1513
    %v1522 = vcombine.high %v1520, %v1520
    %v1523 = vcombine.high %v1059, %v1059
    %v1525 = vunpack.c.l.s4 1983009808
    %v1526 = vunpack.c.0.s8 %v1525
    %v1527 = vlaneseq
    %v1528 = vshrl.u32 %v1527, 7
    %v1529 = vsub.s32 %v1526, %v1528
    %v1530 = vrot.slane %v1059, %v1529
    %v1532 = vunpack.c.l.s4 1983009808
    %v1533 = vunpack.c.0.s8 %v1532
    %v1534 = vlaneseq
    %v1535 = vshrl.u32 %v1534, 7
    %v1536 = vsub.s32 %v1533, %v1535
    %v1537 = vrot.slane %v1523, %v1536
    %v1538 = vcombine.high %v1530, %v1530
    %v1539 = vcombine.high %v1537, %v1537
    %v1540 = vcombine.high %v1060, %v1060
    %v1542 = vunpack.c.l.s4 1983009808
    %v1543 = vunpack.c.0.s8 %v1542
    %v1544 = vlaneseq
    %v1545 = vshrl.u32 %v1544, 7
    %v1546 = vsub.s32 %v1543, %v1545
    %v1547 = vrot.slane %v1060, %v1546
    %v1549 = vunpack.c.l.s4 1983009808
    %v1550 = vunpack.c.0.s8 %v1549
    %v1551 = vlaneseq
    %v1552 = vshrl.u32 %v1551, 7
    %v1553 = vsub.s32 %v1550, %v1552
    %v1554 = vrot.slane %v1540, %v1553
    %v1555 = vcombine.high %v1547, %v1547
    %v1556 = vcombine.high %v1554, %v1554
    %v1557 = vcombine.high %v1061, %v1061
    %v1559 = vunpack.c.l.s4 1983009808
    %v1560 = vunpack.c.0.s8 %v1559
    %v1561 = vlaneseq
    %v1562 = vshrl.u32 %v1561, 7
    %v1563 = vsub.s32 %v1560, %v1562
    %v1564 = vrot.slane %v1061, %v1563
    %v1566 = vunpack.c.l.s4 1983009808
    %v1567 = vunpack.c.0.s8 %v1566
    %v1568 = vlaneseq
    %v1569 = vshrl.u32 %v1568, 7
    %v1570 = vsub.s32 %v1567, %v1569
    %v1571 = vrot.slane %v1557, %v1570
    %v1572 = vcombine.high %v1564, %v1564
    %v1573 = vcombine.high %v1571, %v1571
    %v1574 = vcombine.high %v1062, %v1062
    %v1576 = vunpack.c.l.s4 1983009808
    %v1577 = vunpack.c.0.s8 %v1576
    %v1578 = vlaneseq
    %v1579 = vshrl.u32 %v1578, 7
    %v1580 = vsub.s32 %v1577, %v1579
    %v1581 = vrot.slane %v1062, %v1580
    %v1583 = vunpack.c.l.s4 1983009808
    %v1584 = vunpack.c.0.s8 %v1583
    %v1585 = vlaneseq
    %v1586 = vshrl.u32 %v1585, 7
    %v1587 = vsub.s32 %v1584, %v1586
    %v1588 = vrot.slane %v1574, %v1587
    %v1589 = vcombine.high %v1581, %v1581
    %v1590 = vcombine.high %v1588, %v1588
    %v1591 = vcombine.high %v1063, %v1063
    %v1593 = vunpack.c.l.s4 1983009808
    %v1594 = vunpack.c.0.s8 %v1593
    %v1595 = vlaneseq
    %v1596 = vshrl.u32 %v1595, 7
    %v1597 = vsub.s32 %v1594, %v1596
    %v1598 = vrot.slane %v1063, %v1597
    %v1600 = vunpack.c.l.s4 1983009808
    %v1601 = vunpack.c.0.s8 %v1600
    %v1602 = vlaneseq
    %v1603 = vshrl.u32 %v1602, 7
    %v1604 = vsub.s32 %v1601, %v1603
    %v1605 = vrot.slane %v1591, %v1604
    %v1606 = vcombine.high %v1598, %v1598
    %v1607 = vcombine.high %v1605, %v1605
    %v1608 = vcombine.high %v1064, %v1064
    %v1610 = vunpack.c.l.s4 1983009808
    %v1611 = vunpack.c.0.s8 %v1610
    %v1612 = vlaneseq
    %v1613 = vshrl.u32 %v1612, 7
    %v1614 = vsub.s32 %v1611, %v1613
    %v1615 = vrot.slane %v1064, %v1614
    %v1617 = vunpack.c.l.s4 1983009808
    %v1618 = vunpack.c.0.s8 %v1617
    %v1619 = vlaneseq
    %v1620 = vshrl.u32 %v1619, 7
    %v1621 = vsub.s32 %v1618, %v1620
    %v1622 = vrot.slane %v1608, %v1621
    %v1623 = vcombine.high %v1615, %v1615
    %v1624 = vcombine.high %v1622, %v1622
    %v1625 = vcombine.high %v1065, %v1065
    %v1627 = vunpack.c.l.s4 1983009808
    %v1628 = vunpack.c.0.s8 %v1627
    %v1629 = vlaneseq
    %v1630 = vshrl.u32 %v1629, 7
    %v1631 = vsub.s32 %v1628, %v1630
    %v1632 = vrot.slane %v1065, %v1631
    %v1634 = vunpack.c.l.s4 1983009808
    %v1635 = vunpack.c.0.s8 %v1634
    %v1636 = vlaneseq
    %v1637 = vshrl.u32 %v1636, 7
    %v1638 = vsub.s32 %v1635, %v1637
    %v1639 = vrot.slane %v1625, %v1638
    %v1640 = vcombine.high %v1632, %v1632
    %v1641 = vcombine.high %v1639, %v1639
    %v1770 = vrot.slane %v1105, 7
    %v1771 = vrot.slane %v1770, 2
    %v1772 = vrot.slane %v1113, 7
    %v1773 = vrot.slane %v1772, 2
    %v1774 = vrot.slane %v1112, 7
    %v1775 = vrot.slane %v1774, 2
    %v1776 = vrot.slane %v1114, 7
    %v1777 = vrot.slane %v1776, 2
    %v1778 = vrot.slane %v1122, 7
    %v1779 = vrot.slane %v1778, 2
    %v1780 = vrot.slane %v1130, 7
    %v1781 = vrot.slane %v1780, 2
    %v1782 = vrot.slane %v1129, 7
    %v1783 = vrot.slane %v1782, 2
    %v1784 = vrot.slane %v1131, 7
    %v1785 = vrot.slane %v1784, 2
    %v1786 = vrot.slane %v1139, 7
    %v1787 = vrot.slane %v1786, 2
    %v1788 = vrot.slane %v1147, 7
    %v1789 = vrot.slane %v1788, 2
    %v1790 = vrot.slane %v1146, 7
    %v1791 = vrot.slane %v1790, 2
    %v1792 = vrot.slane %v1148, 7
    %v1793 = vrot.slane %v1792, 2
    %v1794 = vrot.slane %v1156, 7
    %v1795 = vrot.slane %v1794, 2
    %v1796 = vrot.slane %v1164, 7
    %v1797 = vrot.slane %v1796, 2
    %v1798 = vrot.slane %v1163, 7
    %v1799 = vrot.slane %v1798, 2
    %v1800 = vrot.slane %v1165, 7
    %v1801 = vrot.slane %v1800, 2
    %v1802 = vrot.slane %v1173, 7
    %v1803 = vrot.slane %v1802, 2
    %v1804 = vrot.slane %v1181, 7
    %v1805 = vrot.slane %v1804, 2
    %v1806 = vrot.slane %v1180, 7
    %v1807 = vrot.slane %v1806, 2
    %v1808 = vrot.slane %v1182, 7
    %v1809 = vrot.slane %v1808, 2
    %v1810 = vrot.slane %v1190, 7
    %v1811 = vrot.slane %v1810, 2
    %v1812 = vrot.slane %v1198, 7
    %v1813 = vrot.slane %v1812, 2
    %v1814 = vrot.slane %v1197, 7
    %v1815 = vrot.slane %v1814, 2
    %v1816 = vrot.slane %v1199, 7
    %v1817 = vrot.slane %v1816, 2
    %v1818 = vrot.slane %v1207, 7
    %v1819 = vrot.slane %v1818, 2
    %v1820 = vrot.slane %v1215, 7
    %v1821 = vrot.slane %v1820, 2
    %v1822 = vrot.slane %v1214, 7
    %v1823 = vrot.slane %v1822, 2
    %v1824 = vrot.slane %v1216, 7
    %v1825 = vrot.slane %v1824, 2
    %v1826 = vrot.slane %v1224, 7
    %v1827 = vrot.slane %v1826, 2
    %v1828 = vrot.slane %v1232, 7
    %v1829 = vrot.slane %v1828, 2
    %v1830 = vrot.slane %v1231, 7
    %v1831 = vrot.slane %v1830, 2
    %v1832 = vrot.slane %v1233, 7
    %v1833 = vrot.slane %v1832, 2
    %v1834 = vrot.slane %v1241, 7
    %v1835 = vrot.slane %v1834, 2
    %v1836 = vrot.slane %v1249, 7
    %v1837 = vrot.slane %v1836, 2
    %v1838 = vrot.slane %v1248, 7
    %v1839 = vrot.slane %v1838, 2
    %v1840 = vrot.slane %v1250, 7
    %v1841 = vrot.slane %v1840, 2
    %v1842 = vrot.slane %v1258, 7
    %v1843 = vrot.slane %v1842, 2
    %v1844 = vrot.slane %v1266, 7
    %v1845 = vrot.slane %v1844, 2
    %v1846 = vrot.slane %v1265, 7
    %v1847 = vrot.slane %v1846, 2
    %v1848 = vrot.slane %v1267, 7
    %v1849 = vrot.slane %v1848, 2
    %v1850 = vrot.slane %v1275, 7
    %v1851 = vrot.slane %v1850, 2
    %v1852 = vrot.slane %v1283, 7
    %v1853 = vrot.slane %v1852, 2
    %v1854 = vrot.slane %v1282, 7
    %v1855 = vrot.slane %v1854, 2
    %v1856 = vrot.slane %v1284, 7
    %v1857 = vrot.slane %v1856, 2
    %v1858 = vrot.slane %v1292, 7
    %v1859 = vrot.slane %v1858, 2
    %v1860 = vrot.slane %v1300, 7
    %v1861 = vrot.slane %v1860, 2
    %v1862 = vrot.slane %v1299, 7
    %v1863 = vrot.slane %v1862, 2
    %v1864 = vrot.slane %v1301, 7
    %v1865 = vrot.slane %v1864, 2
    %v1866 = vrot.slane %v1309, 7
    %v1867 = vrot.slane %v1866, 2
    %v1868 = vrot.slane %v1317, 7
    %v1869 = vrot.slane %v1868, 2
    %v1870 = vrot.slane %v1316, 7
    %v1871 = vrot.slane %v1870, 2
    %v1872 = vrot.slane %v1318, 7
    %v1873 = vrot.slane %v1872, 2
    %v1874 = vrot.slane %v1326, 7
    %v1875 = vrot.slane %v1874, 2
    %v1876 = vrot.slane %v1334, 7
    %v1877 = vrot.slane %v1876, 2
    %v1878 = vrot.slane %v1333, 7
    %v1879 = vrot.slane %v1878, 2
    %v1880 = vrot.slane %v1335, 7
    %v1881 = vrot.slane %v1880, 2
    %v1882 = vrot.slane %v1343, 7
    %v1883 = vrot.slane %v1882, 2
    %v1884 = vrot.slane %v1351, 7
    %v1885 = vrot.slane %v1884, 2
    %v1886 = vrot.slane %v1350, 7
    %v1887 = vrot.slane %v1886, 2
    %v1888 = vrot.slane %v1352, 7
    %v1889 = vrot.slane %v1888, 2
    %v1890 = vrot.slane %v1360, 7
    %v1891 = vrot.slane %v1890, 2
    %v1892 = vrot.slane %v1368, 7
    %v1893 = vrot.slane %v1892, 2
    %v1894 = vrot.slane %v1367, 7
    %v1895 = vrot.slane %v1894, 2
    %v1896 = vrot.slane %v1369, 7
    %v1897 = vrot.slane %v1896, 2
    %v1898 = vrot.slane %v1377, 7
    %v1899 = vrot.slane %v1898, 2
    %v1900 = vrot.slane %v1385, 7
    %v1901 = vrot.slane %v1900, 2
    %v1902 = vrot.slane %v1384, 7
    %v1903 = vrot.slane %v1902, 2
    %v1904 = vrot.slane %v1386, 7
    %v1905 = vrot.slane %v1904, 2
    %v1906 = vrot.slane %v1394, 7
    %v1907 = vrot.slane %v1906, 2
    %v1908 = vrot.slane %v1402, 7
    %v1909 = vrot.slane %v1908, 2
    %v1910 = vrot.slane %v1401, 7
    %v1911 = vrot.slane %v1910, 2
    %v1912 = vrot.slane %v1403, 7
    %v1913 = vrot.slane %v1912, 2
    %v1914 = vrot.slane %v1411, 7
    %v1915 = vrot.slane %v1914, 2
    %v1916 = vrot.slane %v1419, 7
    %v1917 = vrot.slane %v1916, 2
    %v1918 = vrot.slane %v1418, 7
    %v1919 = vrot.slane %v1918, 2
    %v1920 = vrot.slane %v1420, 7
    %v1921 = vrot.slane %v1920, 2
    %v1922 = vrot.slane %v1428, 7
    %v1923 = vrot.slane %v1922, 2
    %v1924 = vrot.slane %v1436, 7
    %v1925 = vrot.slane %v1924, 2
    %v1926 = vrot.slane %v1435, 7
    %v1927 = vrot.slane %v1926, 2
    %v1928 = vrot.slane %v1437, 7
    %v1929 = vrot.slane %v1928, 2
    %v1930 = vrot.slane %v1445, 7
    %v1931 = vrot.slane %v1930, 2
    %v1932 = vrot.slane %v1453, 7
    %v1933 = vrot.slane %v1932, 2
    %v1934 = vrot.slane %v1452, 7
    %v1935 = vrot.slane %v1934, 2
    %v1936 = vrot.slane %v1454, 7
    %v1937 = vrot.slane %v1936, 2
    %v1938 = vrot.slane %v1462, 7
    %v1939 = vrot.slane %v1938, 2
    %v1940 = vrot.slane %v1470, 7
    %v1941 = vrot.slane %v1940, 2
    %v1942 = vrot.slane %v1469, 7
    %v1943 = vrot.slane %v1942, 2
    %v1944 = vrot.slane %v1471, 7
    %v1945 = vrot.slane %v1944, 2
    %v1946 = vrot.slane %v1479, 7
    %v1947 = vrot.slane %v1946, 2
    %v1948 = vrot.slane %v1487, 7
    %v1949 = vrot.slane %v1948, 2
    %v1950 = vrot.slane %v1486, 7
    %v1951 = vrot.slane %v1950, 2
    %v1952 = vrot.slane %v1488, 7
    %v1953 = vrot.slane %v1952, 2
    %v1954 = vrot.slane %v1496, 7
    %v1955 = vrot.slane %v1954, 2
    %v1956 = vrot.slane %v1504, 7
    %v1957 = vrot.slane %v1956, 2
    %v1958 = vrot.slane %v1503, 7
    %v1959 = vrot.slane %v1958, 2
    %v1960 = vrot.slane %v1505, 7
    %v1961 = vrot.slane %v1960, 2
    %v1962 = vrot.slane %v1513, 7
    %v1963 = vrot.slane %v1962, 2
    %v1964 = vrot.slane %v1521, 7
    %v1965 = vrot.slane %v1964, 2
    %v1966 = vrot.slane %v1520, 7
    %v1967 = vrot.slane %v1966, 2
    %v1968 = vrot.slane %v1522, 7
    %v1969 = vrot.slane %v1968, 2
    %v1970 = vrot.slane %v1530, 7
    %v1971 = vrot.slane %v1970, 2
    %v1972 = vrot.slane %v1538, 7
    %v1973 = vrot.slane %v1972, 2
    %v1974 = vrot.slane %v1537, 7
    %v1975 = vrot.slane %v1974, 2
    %v1976 = vrot.slane %v1539, 7
    %v1977 = vrot.slane %v1976, 2
    %v1978 = vrot.slane %v1547, 7
    %v1979 = vrot.slane %v1978, 2
    %v1980 = vrot.slane %v1555, 7
    %v1981 = vrot.slane %v1980, 2
    %v1982 = vrot.slane %v1554, 7
    %v1983 = vrot.slane %v1982, 2
    %v1984 = vrot.slane %v1556, 7
    %v1985 = vrot.slane %v1984, 2
    %v1986 = vrot.slane %v1564, 7
    %v1987 = vrot.slane %v1986, 2
    %v1988 = vrot.slane %v1572, 7
    %v1989 = vrot.slane %v1988, 2
    %v1990 = vrot.slane %v1571, 7
    %v1991 = vrot.slane %v1990, 2
    %v1992 = vrot.slane %v1573, 7
    %v1993 = vrot.slane %v1992, 2
    %v1994 = vrot.slane %v1581, 7
    %v1995 = vrot.slane %v1994, 2
    %v1996 = vrot.slane %v1589, 7
    %v1997 = vrot.slane %v1996, 2
    %v1998 = vrot.slane %v1588, 7
    %v1999 = vrot.slane %v1998, 2
    %v2000 = vrot.slane %v1590, 7
    %v2001 = vrot.slane %v2000, 2
    %v2002 = vrot.slane %v1598, 7
    %v2003 = vrot.slane %v2002, 2
    %v2004 = vrot.slane %v1606, 7
    %v2005 = vrot.slane %v2004, 2
    %v2006 = vrot.slane %v1605, 7
    %v2007 = vrot.slane %v2006, 2
    %v2008 = vrot.slane %v1607, 7
    %v2009 = vrot.slane %v2008, 2
    %v2010 = vrot.slane %v1615, 7
    %v2011 = vrot.slane %v2010, 2
    %v2012 = vrot.slane %v1623, 7
    %v2013 = vrot.slane %v2012, 2
    %v2014 = vrot.slane %v1622, 7
    %v2015 = vrot.slane %v2014, 2
    %v2016 = vrot.slane %v1624, 7
    %v2017 = vrot.slane %v2016, 2
    %v2018 = vrot.slane %v1632, 7
    %v2019 = vrot.slane %v2018, 2
    %v2020 = vrot.slane %v1640, 7
    %v2021 = vrot.slane %v2020, 2
    %v2022 = vrot.slane %v1639, 7
    %v2023 = vrot.slane %v2022, 2
    %v2024 = vrot.slane %v1641, 7
    %v2025 = vrot.slane %v2024, 2
    %v2154 = vmax.f32 %v1105, %v1771
    %v2155 = vmax.f32 %v1113, %v1773
    %v2156 = vmax.f32 %v1112, %v1775
    %v2157 = vmax.f32 %v1114, %v1777
    %v2158 = vmax.f32 %v1122, %v1779
    %v2159 = vmax.f32 %v1130, %v1781
    %v2160 = vmax.f32 %v1129, %v1783
    %v2161 = vmax.f32 %v1131, %v1785
    %v2162 = vmax.f32 %v1139, %v1787
    %v2163 = vmax.f32 %v1147, %v1789
    %v2164 = vmax.f32 %v1146, %v1791
    %v2165 = vmax.f32 %v1148, %v1793
    %v2166 = vmax.f32 %v1156, %v1795
    %v2167 = vmax.f32 %v1164, %v1797
    %v2168 = vmax.f32 %v1163, %v1799
    %v2169 = vmax.f32 %v1165, %v1801
    %v2170 = vmax.f32 %v1173, %v1803
    %v2171 = vmax.f32 %v1181, %v1805
    %v2172 = vmax.f32 %v1180, %v1807
    %v2173 = vmax.f32 %v1182, %v1809
    %v2174 = vmax.f32 %v1190, %v1811
    %v2175 = vmax.f32 %v1198, %v1813
    %v2176 = vmax.f32 %v1197, %v1815
    %v2177 = vmax.f32 %v1199, %v1817
    %v2178 = vmax.f32 %v1207, %v1819
    %v2179 = vmax.f32 %v1215, %v1821
    %v2180 = vmax.f32 %v1214, %v1823
    %v2181 = vmax.f32 %v1216, %v1825
    %v2182 = vmax.f32 %v1224, %v1827
    %v2183 = vmax.f32 %v1232, %v1829
    %v2184 = vmax.f32 %v1231, %v1831
    %v2185 = vmax.f32 %v1233, %v1833
    %v2186 = vmax.f32 %v1241, %v1835
    %v2187 = vmax.f32 %v1249, %v1837
    %v2188 = vmax.f32 %v1248, %v1839
    %v2189 = vmax.f32 %v1250, %v1841
    %v2190 = vmax.f32 %v1258, %v1843
    %v2191 = vmax.f32 %v1266, %v1845
    %v2192 = vmax.f32 %v1265, %v1847
    %v2193 = vmax.f32 %v1267, %v1849
    %v2194 = vmax.f32 %v1275, %v1851
    %v2195 = vmax.f32 %v1283, %v1853
    %v2196 = vmax.f32 %v1282, %v1855
    %v2197 = vmax.f32 %v1284, %v1857
    %v2198 = vmax.f32 %v1292, %v1859
    %v2199 = vmax.f32 %v1300, %v1861
    %v2200 = vmax.f32 %v1299, %v1863
    %v2201 = vmax.f32 %v1301, %v1865
    %v2202 = vmax.f32 %v1309, %v1867
    %v2203 = vmax.f32 %v1317, %v1869
    %v2204 = vmax.f32 %v1316, %v1871
    %v2205 = vmax.f32 %v1318, %v1873
    %v2206 = vmax.f32 %v1326, %v1875
    %v2207 = vmax.f32 %v1334, %v1877
    %v2208 = vmax.f32 %v1333, %v1879
    %v2209 = vmax.f32 %v1335, %v1881
    %v2210 = vmax.f32 %v1343, %v1883
    %v2211 = vmax.f32 %v1351, %v1885
    %v2212 = vmax.f32 %v1350, %v1887
    %v2213 = vmax.f32 %v1352, %v1889
    %v2214 = vmax.f32 %v1360, %v1891
    %v2215 = vmax.f32 %v1368, %v1893
    %v2216 = vmax.f32 %v1367, %v1895
    %v2217 = vmax.f32 %v1369, %v1897
    %v2218 = vmax.f32 %v1377, %v1899
    %v2219 = vmax.f32 %v1385, %v1901
    %v2220 = vmax.f32 %v1384, %v1903
    %v2221 = vmax.f32 %v1386, %v1905
    %v2222 = vmax.f32 %v1394, %v1907
    %v2223 = vmax.f32 %v1402, %v1909
    %v2224 = vmax.f32 %v1401, %v1911
    %v2225 = vmax.f32 %v1403, %v1913
    %v2226 = vmax.f32 %v1411, %v1915
    %v2227 = vmax.f32 %v1419, %v1917
    %v2228 = vmax.f32 %v1418, %v1919
    %v2229 = vmax.f32 %v1420, %v1921
    %v2230 = vmax.f32 %v1428, %v1923
    %v2231 = vmax.f32 %v1436, %v1925
    %v2232 = vmax.f32 %v1435, %v1927
    %v2233 = vmax.f32 %v1437, %v1929
    %v2234 = vmax.f32 %v1445, %v1931
    %v2235 = vmax.f32 %v1453, %v1933
    %v2236 = vmax.f32 %v1452, %v1935
    %v2237 = vmax.f32 %v1454, %v1937
    %v2238 = vmax.f32 %v1462, %v1939
    %v2239 = vmax.f32 %v1470, %v1941
    %v2240 = vmax.f32 %v1469, %v1943
    %v2241 = vmax.f32 %v1471, %v1945
    %v2242 = vmax.f32 %v1479, %v1947
    %v2243 = vmax.f32 %v1487, %v1949
    %v2244 = vmax.f32 %v1486, %v1951
    %v2245 = vmax.f32 %v1488, %v1953
    %v2246 = vmax.f32 %v1496, %v1955
    %v2247 = vmax.f32 %v1504, %v1957
    %v2248 = vmax.f32 %v1503, %v1959
    %v2249 = vmax.f32 %v1505, %v1961
    %v2250 = vmax.f32 %v1513, %v1963
    %v2251 = vmax.f32 %v1521, %v1965
    %v2252 = vmax.f32 %v1520, %v1967
    %v2253 = vmax.f32 %v1522, %v1969
    %v2254 = vmax.f32 %v1530, %v1971
    %v2255 = vmax.f32 %v1538, %v1973
    %v2256 = vmax.f32 %v1537, %v1975
    %v2257 = vmax.f32 %v1539, %v1977
    %v2258 = vmax.f32 %v1547, %v1979
    %v2259 = vmax.f32 %v1555, %v1981
    %v2260 = vmax.f32 %v1554, %v1983
    %v2261 = vmax.f32 %v1556, %v1985
    %v2262 = vmax.f32 %v1564, %v1987
    %v2263 = vmax.f32 %v1572, %v1989
    %v2264 = vmax.f32 %v1571, %v1991
    %v2265 = vmax.f32 %v1573, %v1993
    %v2266 = vmax.f32 %v1581, %v1995
    %v2267 = vmax.f32 %v1589, %v1997
    %v2268 = vmax.f32 %v1588, %v1999
    %v2269 = vmax.f32 %v1590, %v2001
    %v2270 = vmax.f32 %v1598, %v2003
    %v2271 = vmax.f32 %v1606, %v2005
    %v2272 = vmax.f32 %v1605, %v2007
    %v2273 = vmax.f32 %v1607, %v2009
    %v2274 = vmax.f32 %v1615, %v2011
    %v2275 = vmax.f32 %v1623, %v2013
    %v2276 = vmax.f32 %v1622, %v2015
    %v2277 = vmax.f32 %v1624, %v2017
    %v2278 = vmax.f32 %v1632, %v2019
    %v2279 = vmax.f32 %v1640, %v2021
    %v2280 = vmax.f32 %v1639, %v2023
    %v2281 = vmax.f32 %v1641, %v2025
    %vm2410 = vcmask 1044484
    %v2411 = vsel %vm2410, %v2154, %v2154
    %vm2412 = vcmask 1046534
    %v2413 = vsel %vm2412, %v2154, %v2411
    %v2414 = vrot.slane %v2155, 7
    %vm2415 = vcmask 1041409
    %v2416 = vsel %vm2415, %v2414, %v2413
    %vm2417 = vcmask 1043459
    %v2418 = vsel %vm2417, %v2414, %v2416
    %vm2419 = vcmask 1045509
    %v2420 = vsel %vm2419, %v2414, %v2418
    %vm2421 = vcmask 1047559
    %v2422 = vsel %vm2421, %v2414, %v2420
    %v2423 = vsel %vm2410, %v2156, %v2156
    %v2424 = vsel %vm2412, %v2156, %v2423
    %v2425 = vrot.slane %v2157, 7
    %v2426 = vsel %vm2415, %v2425, %v2424
    %v2427 = vsel %vm2417, %v2425, %v2426
    %v2428 = vsel %vm2419, %v2425, %v2427
    %v2429 = vsel %vm2421, %v2425, %v2428
    %v2430 = vsel %vm2410, %v2158, %v2158
    %v2431 = vsel %vm2412, %v2158, %v2430
    %v2432 = vrot.slane %v2159, 7
    %v2433 = vsel %vm2415, %v2432, %v2431
    %v2434 = vsel %vm2417, %v2432, %v2433
    %v2435 = vsel %vm2419, %v2432, %v2434
    %v2436 = vsel %vm2421, %v2432, %v2435
    %v2437 = vsel %vm2410, %v2160, %v2160
    %v2438 = vsel %vm2412, %v2160, %v2437
    %v2439 = vrot.slane %v2161, 7
    %v2440 = vsel %vm2415, %v2439, %v2438
    %v2441 = vsel %vm2417, %v2439, %v2440
    %v2442 = vsel %vm2419, %v2439, %v2441
    %v2443 = vsel %vm2421, %v2439, %v2442
    %v2444 = vsel %vm2410, %v2162, %v2162
    %v2445 = vsel %vm2412, %v2162, %v2444
    %v2446 = vrot.slane %v2163, 7
    %v2447 = vsel %vm2415, %v2446, %v2445
    %v2448 = vsel %vm2417, %v2446, %v2447
    %v2449 = vsel %vm2419, %v2446, %v2448
    %v2450 = vsel %vm2421, %v2446, %v2449
    %v2451 = vsel %vm2410, %v2164, %v2164
    %v2452 = vsel %vm2412, %v2164, %v2451
    %v2453 = vrot.slane %v2165, 7
    %v2454 = vsel %vm2415, %v2453, %v2452
    %v2455 = vsel %vm2417, %v2453, %v2454
    %v2456 = vsel %vm2419, %v2453, %v2455
    %v2457 = vsel %vm2421, %v2453, %v2456
    %v2458 = vsel %vm2410, %v2166, %v2166
    %v2459 = vsel %vm2412, %v2166, %v2458
    %v2460 = vrot.slane %v2167, 7
    %v2461 = vsel %vm2415, %v2460, %v2459
    %v2462 = vsel %vm2417, %v2460, %v2461
    %v2463 = vsel %vm2419, %v2460, %v2462
    %v2464 = vsel %vm2421, %v2460, %v2463
    %v2465 = vsel %vm2410, %v2168, %v2168
    %v2466 = vsel %vm2412, %v2168, %v2465
    %v2467 = vrot.slane %v2169, 7
    %v2468 = vsel %vm2415, %v2467, %v2466
    %v2469 = vsel %vm2417, %v2467, %v2468
    %v2470 = vsel %vm2419, %v2467, %v2469
    %v2471 = vsel %vm2421, %v2467, %v2470
    %v2472 = vsel %vm2410, %v2170, %v2170
    %v2473 = vsel %vm2412, %v2170, %v2472
    %v2474 = vrot.slane %v2171, 7
    %v2475 = vsel %vm2415, %v2474, %v2473
    %v2476 = vsel %vm2417, %v2474, %v2475
    %v2477 = vsel %vm2419, %v2474, %v2476
    %v2478 = vsel %vm2421, %v2474, %v2477
    %v2479 = vsel %vm2410, %v2172, %v2172
    %v2480 = vsel %vm2412, %v2172, %v2479
    %v2481 = vrot.slane %v2173, 7
    %v2482 = vsel %vm2415, %v2481, %v2480
    %v2483 = vsel %vm2417, %v2481, %v2482
    %v2484 = vsel %vm2419, %v2481, %v2483
    %v2485 = vsel %vm2421, %v2481, %v2484
    %v2486 = vsel %vm2410, %v2174, %v2174
    %v2487 = vsel %vm2412, %v2174, %v2486
    %v2488 = vrot.slane %v2175, 7
    %v2489 = vsel %vm2415, %v2488, %v2487
    %v2490 = vsel %vm2417, %v2488, %v2489
    %v2491 = vsel %vm2419, %v2488, %v2490
    %v2492 = vsel %vm2421, %v2488, %v2491
    %v2493 = vsel %vm2410, %v2176, %v2176
    %v2494 = vsel %vm2412, %v2176, %v2493
    %v2495 = vrot.slane %v2177, 7
    %v2496 = vsel %vm2415, %v2495, %v2494
    %v2497 = vsel %vm2417, %v2495, %v2496
    %v2498 = vsel %vm2419, %v2495, %v2497
    %v2499 = vsel %vm2421, %v2495, %v2498
    %v2500 = vsel %vm2410, %v2178, %v2178
    %v2501 = vsel %vm2412, %v2178, %v2500
    %v2502 = vrot.slane %v2179, 7
    %v2503 = vsel %vm2415, %v2502, %v2501
    %v2504 = vsel %vm2417, %v2502, %v2503
    %v2505 = vsel %vm2419, %v2502, %v2504
    %v2506 = vsel %vm2421, %v2502, %v2505
    %v2507 = vsel %vm2410, %v2180, %v2180
    %v2508 = vsel %vm2412, %v2180, %v2507
    %v2509 = vrot.slane %v2181, 7
    %v2510 = vsel %vm2415, %v2509, %v2508
    %v2511 = vsel %vm2417, %v2509, %v2510
    %v2512 = vsel %vm2419, %v2509, %v2511
    %v2513 = vsel %vm2421, %v2509, %v2512
    %v2514 = vsel %vm2410, %v2182, %v2182
    %v2515 = vsel %vm2412, %v2182, %v2514
    %v2516 = vrot.slane %v2183, 7
    %v2517 = vsel %vm2415, %v2516, %v2515
    %v2518 = vsel %vm2417, %v2516, %v2517
    %v2519 = vsel %vm2419, %v2516, %v2518
    %v2520 = vsel %vm2421, %v2516, %v2519
    %v2521 = vsel %vm2410, %v2184, %v2184
    %v2522 = vsel %vm2412, %v2184, %v2521
    %v2523 = vrot.slane %v2185, 7
    %v2524 = vsel %vm2415, %v2523, %v2522
    %v2525 = vsel %vm2417, %v2523, %v2524
    %v2526 = vsel %vm2419, %v2523, %v2525
    %v2527 = vsel %vm2421, %v2523, %v2526
    %v2528 = vsel %vm2410, %v2186, %v2186
    %v2529 = vsel %vm2412, %v2186, %v2528
    %v2530 = vrot.slane %v2187, 7
    %v2531 = vsel %vm2415, %v2530, %v2529
    %v2532 = vsel %vm2417, %v2530, %v2531
    %v2533 = vsel %vm2419, %v2530, %v2532
    %v2534 = vsel %vm2421, %v2530, %v2533
    %v2535 = vsel %vm2410, %v2188, %v2188
    %v2536 = vsel %vm2412, %v2188, %v2535
    %v2537 = vrot.slane %v2189, 7
    %v2538 = vsel %vm2415, %v2537, %v2536
    %v2539 = vsel %vm2417, %v2537, %v2538
    %v2540 = vsel %vm2419, %v2537, %v2539
    %v2541 = vsel %vm2421, %v2537, %v2540
    %v2542 = vsel %vm2410, %v2190, %v2190
    %v2543 = vsel %vm2412, %v2190, %v2542
    %v2544 = vrot.slane %v2191, 7
    %v2545 = vsel %vm2415, %v2544, %v2543
    %v2546 = vsel %vm2417, %v2544, %v2545
    %v2547 = vsel %vm2419, %v2544, %v2546
    %v2548 = vsel %vm2421, %v2544, %v2547
    %v2549 = vsel %vm2410, %v2192, %v2192
    %v2550 = vsel %vm2412, %v2192, %v2549
    %v2551 = vrot.slane %v2193, 7
    %v2552 = vsel %vm2415, %v2551, %v2550
    %v2553 = vsel %vm2417, %v2551, %v2552
    %v2554 = vsel %vm2419, %v2551, %v2553
    %v2555 = vsel %vm2421, %v2551, %v2554
    %v2556 = vsel %vm2410, %v2194, %v2194
    %v2557 = vsel %vm2412, %v2194, %v2556
    %v2558 = vrot.slane %v2195, 7
    %v2559 = vsel %vm2415, %v2558, %v2557
    %v2560 = vsel %vm2417, %v2558, %v2559
    %v2561 = vsel %vm2419, %v2558, %v2560
    %v2562 = vsel %vm2421, %v2558, %v2561
    %v2563 = vsel %vm2410, %v2196, %v2196
    %v2564 = vsel %vm2412, %v2196, %v2563
    %v2565 = vrot.slane %v2197, 7
    %v2566 = vsel %vm2415, %v2565, %v2564
    %v2567 = vsel %vm2417, %v2565, %v2566
    %v2568 = vsel %vm2419, %v2565, %v2567
    %v2569 = vsel %vm2421, %v2565, %v2568
    %v2570 = vsel %vm2410, %v2198, %v2198
    %v2571 = vsel %vm2412, %v2198, %v2570
    %v2572 = vrot.slane %v2199, 7
    %v2573 = vsel %vm2415, %v2572, %v2571
    %v2574 = vsel %vm2417, %v2572, %v2573
    %v2575 = vsel %vm2419, %v2572, %v2574
    %v2576 = vsel %vm2421, %v2572, %v2575
    %v2577 = vsel %vm2410, %v2200, %v2200
    %v2578 = vsel %vm2412, %v2200, %v2577
    %v2579 = vrot.slane %v2201, 7
    %v2580 = vsel %vm2415, %v2579, %v2578
    %v2581 = vsel %vm2417, %v2579, %v2580
    %v2582 = vsel %vm2419, %v2579, %v2581
    %v2583 = vsel %vm2421, %v2579, %v2582
    %v2584 = vsel %vm2410, %v2202, %v2202
    %v2585 = vsel %vm2412, %v2202, %v2584
    %v2586 = vrot.slane %v2203, 7
    %v2587 = vsel %vm2415, %v2586, %v2585
    %v2588 = vsel %vm2417, %v2586, %v2587
    %v2589 = vsel %vm2419, %v2586, %v2588
    %v2590 = vsel %vm2421, %v2586, %v2589
    %v2591 = vsel %vm2410, %v2204, %v2204
    %v2592 = vsel %vm2412, %v2204, %v2591
    %v2593 = vrot.slane %v2205, 7
    %v2594 = vsel %vm2415, %v2593, %v2592
    %v2595 = vsel %vm2417, %v2593, %v2594
    %v2596 = vsel %vm2419, %v2593, %v2595
    %v2597 = vsel %vm2421, %v2593, %v2596
    %v2598 = vsel %vm2410, %v2206, %v2206
    %v2599 = vsel %vm2412, %v2206, %v2598
    %v2600 = vrot.slane %v2207, 7
    %v2601 = vsel %vm2415, %v2600, %v2599
    %v2602 = vsel %vm2417, %v2600, %v2601
    %v2603 = vsel %vm2419, %v2600, %v2602
    %v2604 = vsel %vm2421, %v2600, %v2603
    %v2605 = vsel %vm2410, %v2208, %v2208
    %v2606 = vsel %vm2412, %v2208, %v2605
    %v2607 = vrot.slane %v2209, 7
    %v2608 = vsel %vm2415, %v2607, %v2606
    %v2609 = vsel %vm2417, %v2607, %v2608
    %v2610 = vsel %vm2419, %v2607, %v2609
    %v2611 = vsel %vm2421, %v2607, %v2610
    %v2612 = vsel %vm2410, %v2210, %v2210
    %v2613 = vsel %vm2412, %v2210, %v2612
    %v2614 = vrot.slane %v2211, 7
    %v2615 = vsel %vm2415, %v2614, %v2613
    %v2616 = vsel %vm2417, %v2614, %v2615
    %v2617 = vsel %vm2419, %v2614, %v2616
    %v2618 = vsel %vm2421, %v2614, %v2617
    %v2619 = vsel %vm2410, %v2212, %v2212
    %v2620 = vsel %vm2412, %v2212, %v2619
    %v2621 = vrot.slane %v2213, 7
    %v2622 = vsel %vm2415, %v2621, %v2620
    %v2623 = vsel %vm2417, %v2621, %v2622
    %v2624 = vsel %vm2419, %v2621, %v2623
    %v2625 = vsel %vm2421, %v2621, %v2624
    %v2626 = vsel %vm2410, %v2214, %v2214
    %v2627 = vsel %vm2412, %v2214, %v2626
    %v2628 = vrot.slane %v2215, 7
    %v2629 = vsel %vm2415, %v2628, %v2627
    %v2630 = vsel %vm2417, %v2628, %v2629
    %v2631 = vsel %vm2419, %v2628, %v2630
    %v2632 = vsel %vm2421, %v2628, %v2631
    %v2633 = vsel %vm2410, %v2216, %v2216
    %v2634 = vsel %vm2412, %v2216, %v2633
    %v2635 = vrot.slane %v2217, 7
    %v2636 = vsel %vm2415, %v2635, %v2634
    %v2637 = vsel %vm2417, %v2635, %v2636
    %v2638 = vsel %vm2419, %v2635, %v2637
    %v2639 = vsel %vm2421, %v2635, %v2638
    %v2640 = vsel %vm2410, %v2218, %v2218
    %v2641 = vsel %vm2412, %v2218, %v2640
    %v2642 = vrot.slane %v2219, 7
    %v2643 = vsel %vm2415, %v2642, %v2641
    %v2644 = vsel %vm2417, %v2642, %v2643
    %v2645 = vsel %vm2419, %v2642, %v2644
    %v2646 = vsel %vm2421, %v2642, %v2645
    %v2647 = vsel %vm2410, %v2220, %v2220
    %v2648 = vsel %vm2412, %v2220, %v2647
    %v2649 = vrot.slane %v2221, 7
    %v2650 = vsel %vm2415, %v2649, %v2648
    %v2651 = vsel %vm2417, %v2649, %v2650
    %v2652 = vsel %vm2419, %v2649, %v2651
    %v2653 = vsel %vm2421, %v2649, %v2652
    %v2654 = vsel %vm2410, %v2222, %v2222
    %v2655 = vsel %vm2412, %v2222, %v2654
    %v2656 = vrot.slane %v2223, 7
    %v2657 = vsel %vm2415, %v2656, %v2655
    %v2658 = vsel %vm2417, %v2656, %v2657
    %v2659 = vsel %vm2419, %v2656, %v2658
    %v2660 = vsel %vm2421, %v2656, %v2659
    %v2661 = vsel %vm2410, %v2224, %v2224
    %v2662 = vsel %vm2412, %v2224, %v2661
    %v2663 = vrot.slane %v2225, 7
    %v2664 = vsel %vm2415, %v2663, %v2662
    %v2665 = vsel %vm2417, %v2663, %v2664
    %v2666 = vsel %vm2419, %v2663, %v2665
    %v2667 = vsel %vm2421, %v2663, %v2666
    %v2668 = vsel %vm2410, %v2226, %v2226
    %v2669 = vsel %vm2412, %v2226, %v2668
    %v2670 = vrot.slane %v2227, 7
    %v2671 = vsel %vm2415, %v2670, %v2669
    %v2672 = vsel %vm2417, %v2670, %v2671
    %v2673 = vsel %vm2419, %v2670, %v2672
    %v2674 = vsel %vm2421, %v2670, %v2673
    %v2675 = vsel %vm2410, %v2228, %v2228
    %v2676 = vsel %vm2412, %v2228, %v2675
    %v2677 = vrot.slane %v2229, 7
    %v2678 = vsel %vm2415, %v2677, %v2676
    %v2679 = vsel %vm2417, %v2677, %v2678
    %v2680 = vsel %vm2419, %v2677, %v2679
    %v2681 = vsel %vm2421, %v2677, %v2680
    %v2682 = vsel %vm2410, %v2230, %v2230
    %v2683 = vsel %vm2412, %v2230, %v2682
    %v2684 = vrot.slane %v2231, 7
    %v2685 = vsel %vm2415, %v2684, %v2683
    %v2686 = vsel %vm2417, %v2684, %v2685
    %v2687 = vsel %vm2419, %v2684, %v2686
    %v2688 = vsel %vm2421, %v2684, %v2687
    %v2689 = vsel %vm2410, %v2232, %v2232
    %v2690 = vsel %vm2412, %v2232, %v2689
    %v2691 = vrot.slane %v2233, 7
    %v2692 = vsel %vm2415, %v2691, %v2690
    %v2693 = vsel %vm2417, %v2691, %v2692
    %v2694 = vsel %vm2419, %v2691, %v2693
    %v2695 = vsel %vm2421, %v2691, %v2694
    %v2696 = vsel %vm2410, %v2234, %v2234
    %v2697 = vsel %vm2412, %v2234, %v2696
    %v2698 = vrot.slane %v2235, 7
    %v2699 = vsel %vm2415, %v2698, %v2697
    %v2700 = vsel %vm2417, %v2698, %v2699
    %v2701 = vsel %vm2419, %v2698, %v2700
    %v2702 = vsel %vm2421, %v2698, %v2701
    %v2703 = vsel %vm2410, %v2236, %v2236
    %v2704 = vsel %vm2412, %v2236, %v2703
    %v2705 = vrot.slane %v2237, 7
    %v2706 = vsel %vm2415, %v2705, %v2704
    %v2707 = vsel %vm2417, %v2705, %v2706
    %v2708 = vsel %vm2419, %v2705, %v2707
    %v2709 = vsel %vm2421, %v2705, %v2708
    %v2710 = vsel %vm2410, %v2238, %v2238
    %v2711 = vsel %vm2412, %v2238, %v2710
    %v2712 = vrot.slane %v2239, 7
    %v2713 = vsel %vm2415, %v2712, %v2711
    %v2714 = vsel %vm2417, %v2712, %v2713
    %v2715 = vsel %vm2419, %v2712, %v2714
    %v2716 = vsel %vm2421, %v2712, %v2715
    %v2717 = vsel %vm2410, %v2240, %v2240
    %v2718 = vsel %vm2412, %v2240, %v2717
    %v2719 = vrot.slane %v2241, 7
    %v2720 = vsel %vm2415, %v2719, %v2718
    %v2721 = vsel %vm2417, %v2719, %v2720
    %v2722 = vsel %vm2419, %v2719, %v2721
    %v2723 = vsel %vm2421, %v2719, %v2722
    %v2724 = vsel %vm2410, %v2242, %v2242
    %v2725 = vsel %vm2412, %v2242, %v2724
    %v2726 = vrot.slane %v2243, 7
    %v2727 = vsel %vm2415, %v2726, %v2725
    %v2728 = vsel %vm2417, %v2726, %v2727
    %v2729 = vsel %vm2419, %v2726, %v2728
    %v2730 = vsel %vm2421, %v2726, %v2729
    %v2731 = vsel %vm2410, %v2244, %v2244
    %v2732 = vsel %vm2412, %v2244, %v2731
    %v2733 = vrot.slane %v2245, 7
    %v2734 = vsel %vm2415, %v2733, %v2732
    %v2735 = vsel %vm2417, %v2733, %v2734
    %v2736 = vsel %vm2419, %v2733, %v2735
    %v2737 = vsel %vm2421, %v2733, %v2736
    %v2738 = vsel %vm2410, %v2246, %v2246
    %v2739 = vsel %vm2412, %v2246, %v2738
    %v2740 = vrot.slane %v2247, 7
    %v2741 = vsel %vm2415, %v2740, %v2739
    %v2742 = vsel %vm2417, %v2740, %v2741
    %v2743 = vsel %vm2419, %v2740, %v2742
    %v2744 = vsel %vm2421, %v2740, %v2743
    %v2745 = vsel %vm2410, %v2248, %v2248
    %v2746 = vsel %vm2412, %v2248, %v2745
    %v2747 = vrot.slane %v2249, 7
    %v2748 = vsel %vm2415, %v2747, %v2746
    %v2749 = vsel %vm2417, %v2747, %v2748
    %v2750 = vsel %vm2419, %v2747, %v2749
    %v2751 = vsel %vm2421, %v2747, %v2750
    %v2752 = vsel %vm2410, %v2250, %v2250
    %v2753 = vsel %vm2412, %v2250, %v2752
    %v2754 = vrot.slane %v2251, 7
    %v2755 = vsel %vm2415, %v2754, %v2753
    %v2756 = vsel %vm2417, %v2754, %v2755
    %v2757 = vsel %vm2419, %v2754, %v2756
    %v2758 = vsel %vm2421, %v2754, %v2757
    %v2759 = vsel %vm2410, %v2252, %v2252
    %v2760 = vsel %vm2412, %v2252, %v2759
    %v2761 = vrot.slane %v2253, 7
    %v2762 = vsel %vm2415, %v2761, %v2760
    %v2763 = vsel %vm2417, %v2761, %v2762
    %v2764 = vsel %vm2419, %v2761, %v2763
    %v2765 = vsel %vm2421, %v2761, %v2764
    %v2766 = vsel %vm2410, %v2254, %v2254
    %v2767 = vsel %vm2412, %v2254, %v2766
    %v2768 = vrot.slane %v2255, 7
    %v2769 = vsel %vm2415, %v2768, %v2767
    %v2770 = vsel %vm2417, %v2768, %v2769
    %v2771 = vsel %vm2419, %v2768, %v2770
    %v2772 = vsel %vm2421, %v2768, %v2771
    %v2773 = vsel %vm2410, %v2256, %v2256
    %v2774 = vsel %vm2412, %v2256, %v2773
    %v2775 = vrot.slane %v2257, 7
    %v2776 = vsel %vm2415, %v2775, %v2774
    %v2777 = vsel %vm2417, %v2775, %v2776
    %v2778 = vsel %vm2419, %v2775, %v2777
    %v2779 = vsel %vm2421, %v2775, %v2778
    %v2780 = vsel %vm2410, %v2258, %v2258
    %v2781 = vsel %vm2412, %v2258, %v2780
    %v2782 = vrot.slane %v2259, 7
    %v2783 = vsel %vm2415, %v2782, %v2781
    %v2784 = vsel %vm2417, %v2782, %v2783
    %v2785 = vsel %vm2419, %v2782, %v2784
    %v2786 = vsel %vm2421, %v2782, %v2785
    %v2787 = vsel %vm2410, %v2260, %v2260
    %v2788 = vsel %vm2412, %v2260, %v2787
    %v2789 = vrot.slane %v2261, 7
    %v2790 = vsel %vm2415, %v2789, %v2788
    %v2791 = vsel %vm2417, %v2789, %v2790
    %v2792 = vsel %vm2419, %v2789, %v2791
    %v2793 = vsel %vm2421, %v2789, %v2792
    %v2794 = vsel %vm2410, %v2262, %v2262
    %v2795 = vsel %vm2412, %v2262, %v2794
    %v2796 = vrot.slane %v2263, 7
    %v2797 = vsel %vm2415, %v2796, %v2795
    %v2798 = vsel %vm2417, %v2796, %v2797
    %v2799 = vsel %vm2419, %v2796, %v2798
    %v2800 = vsel %vm2421, %v2796, %v2799
    %v2801 = vsel %vm2410, %v2264, %v2264
    %v2802 = vsel %vm2412, %v2264, %v2801
    %v2803 = vrot.slane %v2265, 7
    %v2804 = vsel %vm2415, %v2803, %v2802
    %v2805 = vsel %vm2417, %v2803, %v2804
    %v2806 = vsel %vm2419, %v2803, %v2805
    %v2807 = vsel %vm2421, %v2803, %v2806
    %v2808 = vsel %vm2410, %v2266, %v2266
    %v2809 = vsel %vm2412, %v2266, %v2808
    %v2810 = vrot.slane %v2267, 7
    %v2811 = vsel %vm2415, %v2810, %v2809
    %v2812 = vsel %vm2417, %v2810, %v2811
    %v2813 = vsel %vm2419, %v2810, %v2812
    %v2814 = vsel %vm2421, %v2810, %v2813
    %v2815 = vsel %vm2410, %v2268, %v2268
    %v2816 = vsel %vm2412, %v2268, %v2815
    %v2817 = vrot.slane %v2269, 7
    %v2818 = vsel %vm2415, %v2817, %v2816
    %v2819 = vsel %vm2417, %v2817, %v2818
    %v2820 = vsel %vm2419, %v2817, %v2819
    %v2821 = vsel %vm2421, %v2817, %v2820
    %v2822 = vsel %vm2410, %v2270, %v2270
    %v2823 = vsel %vm2412, %v2270, %v2822
    %v2824 = vrot.slane %v2271, 7
    %v2825 = vsel %vm2415, %v2824, %v2823
    %v2826 = vsel %vm2417, %v2824, %v2825
    %v2827 = vsel %vm2419, %v2824, %v2826
    %v2828 = vsel %vm2421, %v2824, %v2827
    %v2829 = vsel %vm2410, %v2272, %v2272
    %v2830 = vsel %vm2412, %v2272, %v2829
    %v2831 = vrot.slane %v2273, 7
    %v2832 = vsel %vm2415, %v2831, %v2830
    %v2833 = vsel %vm2417, %v2831, %v2832
    %v2834 = vsel %vm2419, %v2831, %v2833
    %v2835 = vsel %vm2421, %v2831, %v2834
    %v2836 = vsel %vm2410, %v2274, %v2274
    %v2837 = vsel %vm2412, %v2274, %v2836
    %v2838 = vrot.slane %v2275, 7
    %v2839 = vsel %vm2415, %v2838, %v2837
    %v2840 = vsel %vm2417, %v2838, %v2839
    %v2841 = vsel %vm2419, %v2838, %v2840
    %v2842 = vsel %vm2421, %v2838, %v2841
    %v2843 = vsel %vm2410, %v2276, %v2276
    %v2844 = vsel %vm2412, %v2276, %v2843
    %v2845 = vrot.slane %v2277, 7
    %v2846 = vsel %vm2415, %v2845, %v2844
    %v2847 = vsel %vm2417, %v2845, %v2846
    %v2848 = vsel %vm2419, %v2845, %v2847
    %v2849 = vsel %vm2421, %v2845, %v2848
    %v2850 = vsel %vm2410, %v2278, %v2278
    %v2851 = vsel %vm2412, %v2278, %v2850
    %v2852 = vrot.slane %v2279, 7
    %v2853 = vsel %vm2415, %v2852, %v2851
    %v2854 = vsel %vm2417, %v2852, %v2853
    %v2855 = vsel %vm2419, %v2852, %v2854
    %v2856 = vsel %vm2421, %v2852, %v2855
    %v2857 = vsel %vm2410, %v2280, %v2280
    %v2858 = vsel %vm2412, %v2280, %v2857
    %v2859 = vrot.slane %v2281, 7
    %v2860 = vsel %vm2415, %v2859, %v2858
    %v2861 = vsel %vm2417, %v2859, %v2860
    %v2862 = vsel %vm2419, %v2859, %v2861
    %v2863 = vsel %vm2421, %v2859, %v2862
    %v2928 = vcombine.low %v2422, %v2450
    %v2930 = vunpack.c.l.s4 1934713408
    %v2931 = vunpack.c.0.s8 %v2930
    %v2932 = vlaneseq
    %v2933 = vshrl.u32 %v2932, 7
    %v2934 = vsub.s32 %v2931, %v2933
    %v2935 = vrot.slane %v2928, %v2934
    %v2936 = vcombine.high %v2935, 0.0
    %v2937 = vcombine.low %v2478, %v2506
    %v2939 = vunpack.c.l.s4 1934713408
    %v2940 = vunpack.c.0.s8 %v2939
    %v2941 = vlaneseq
    %v2942 = vshrl.u32 %v2941, 7
    %v2943 = vsub.s32 %v2940, %v2942
    %v2944 = vrot.slane %v2937, %v2943
    %v2945 = vcombine.high %v2944, 0.0
    %v2946 = vcombine.low %v2534, %v2562
    %v2948 = vunpack.c.l.s4 1934713408
    %v2949 = vunpack.c.0.s8 %v2948
    %v2950 = vlaneseq
    %v2951 = vshrl.u32 %v2950, 7
    %v2952 = vsub.s32 %v2949, %v2951
    %v2953 = vrot.slane %v2946, %v2952
    %v2954 = vcombine.high %v2953, 0.0
    %v2955 = vcombine.low %v2590, %v2618
    %v2957 = vunpack.c.l.s4 1934713408
    %v2958 = vunpack.c.0.s8 %v2957
    %v2959 = vlaneseq
    %v2960 = vshrl.u32 %v2959, 7
    %v2961 = vsub.s32 %v2958, %v2960
    %v2962 = vrot.slane %v2955, %v2961
    %v2963 = vcombine.high %v2962, 0.0
    %v2964 = vcombine.low %v2429, %v2457
    %v2966 = vunpack.c.l.s4 1934713408
    %v2967 = vunpack.c.0.s8 %v2966
    %v2968 = vlaneseq
    %v2969 = vshrl.u32 %v2968, 7
    %v2970 = vsub.s32 %v2967, %v2969
    %v2971 = vrot.slane %v2964, %v2970
    %v2972 = vcombine.high %v2971, 0.0
    %v2973 = vcombine.low %v2485, %v2513
    %v2975 = vunpack.c.l.s4 1934713408
    %v2976 = vunpack.c.0.s8 %v2975
    %v2977 = vlaneseq
    %v2978 = vshrl.u32 %v2977, 7
    %v2979 = vsub.s32 %v2976, %v2978
    %v2980 = vrot.slane %v2973, %v2979
    %v2981 = vcombine.high %v2980, 0.0
    %v2982 = vcombine.low %v2541, %v2569
    %v2984 = vunpack.c.l.s4 1934713408
    %v2985 = vunpack.c.0.s8 %v2984
    %v2986 = vlaneseq
    %v2987 = vshrl.u32 %v2986, 7
    %v2988 = vsub.s32 %v2985, %v2987
    %v2989 = vrot.slane %v2982, %v2988
    %v2990 = vcombine.high %v2989, 0.0
    %v2991 = vcombine.low %v2597, %v2625
    %v2993 = vunpack.c.l.s4 1934713408
    %v2994 = vunpack.c.0.s8 %v2993
    %v2995 = vlaneseq
    %v2996 = vshrl.u32 %v2995, 7
    %v2997 = vsub.s32 %v2994, %v2996
    %v2998 = vrot.slane %v2991, %v2997
    %v2999 = vcombine.high %v2998, 0.0
    %v3000 = vcombine.low %v2436, %v2464
    %v3002 = vunpack.c.l.s4 1934713408
    %v3003 = vunpack.c.0.s8 %v3002
    %v3004 = vlaneseq
    %v3005 = vshrl.u32 %v3004, 7
    %v3006 = vsub.s32 %v3003, %v3005
    %v3007 = vrot.slane %v3000, %v3006
    %v3008 = vcombine.high %v3007, 0.0
    %v3009 = vcombine.low %v2492, %v2520
    %v3011 = vunpack.c.l.s4 1934713408
    %v3012 = vunpack.c.0.s8 %v3011
    %v3013 = vlaneseq
    %v3014 = vshrl.u32 %v3013, 7
    %v3015 = vsub.s32 %v3012, %v3014
    %v3016 = vrot.slane %v3009, %v3015
    %v3017 = vcombine.high %v3016, 0.0
    %v3018 = vcombine.low %v2548, %v2576
    %v3020 = vunpack.c.l.s4 1934713408
    %v3021 = vunpack.c.0.s8 %v3020
    %v3022 = vlaneseq
    %v3023 = vshrl.u32 %v3022, 7
    %v3024 = vsub.s32 %v3021, %v3023
    %v3025 = vrot.slane %v3018, %v3024
    %v3026 = vcombine.high %v3025, 0.0
    %v3027 = vcombine.low %v2604, %v2632
    %v3029 = vunpack.c.l.s4 1934713408
    %v3030 = vunpack.c.0.s8 %v3029
    %v3031 = vlaneseq
    %v3032 = vshrl.u32 %v3031, 7
    %v3033 = vsub.s32 %v3030, %v3032
    %v3034 = vrot.slane %v3027, %v3033
    %v3035 = vcombine.high %v3034, 0.0
    %v3036 = vcombine.low %v2443, %v2471
    %v3038 = vunpack.c.l.s4 1934713408
    %v3039 = vunpack.c.0.s8 %v3038
    %v3040 = vlaneseq
    %v3041 = vshrl.u32 %v3040, 7
    %v3042 = vsub.s32 %v3039, %v3041
    %v3043 = vrot.slane %v3036, %v3042
    %v3044 = vcombine.high %v3043, 0.0
    %v3045 = vcombine.low %v2499, %v2527
    %v3047 = vunpack.c.l.s4 1934713408
    %v3048 = vunpack.c.0.s8 %v3047
    %v3049 = vlaneseq
    %v3050 = vshrl.u32 %v3049, 7
    %v3051 = vsub.s32 %v3048, %v3050
    %v3052 = vrot.slane %v3045, %v3051
    %v3053 = vcombine.high %v3052, 0.0
    %v3054 = vcombine.low %v2555, %v2583
    %v3056 = vunpack.c.l.s4 1934713408
    %v3057 = vunpack.c.0.s8 %v3056
    %v3058 = vlaneseq
    %v3059 = vshrl.u32 %v3058, 7
    %v3060 = vsub.s32 %v3057, %v3059
    %v3061 = vrot.slane %v3054, %v3060
    %v3062 = vcombine.high %v3061, 0.0
    %v3063 = vcombine.low %v2611, %v2639
    %v3065 = vunpack.c.l.s4 1934713408
    %v3066 = vunpack.c.0.s8 %v3065
    %v3067 = vlaneseq
    %v3068 = vshrl.u32 %v3067, 7
    %v3069 = vsub.s32 %v3066, %v3068
    %v3070 = vrot.slane %v3063, %v3069
    %v3071 = vcombine.high %v3070, 0.0
    %v3072 = vcombine.low %v2646, %v2674
    %v3074 = vunpack.c.l.s4 1934713408
    %v3075 = vunpack.c.0.s8 %v3074
    %v3076 = vlaneseq
    %v3077 = vshrl.u32 %v3076, 7
    %v3078 = vsub.s32 %v3075, %v3077
    %v3079 = vrot.slane %v3072, %v3078
    %v3080 = vcombine.high %v3079, 0.0
    %v3081 = vcombine.low %v2702, %v2730
    %v3083 = vunpack.c.l.s4 1934713408
    %v3084 = vunpack.c.0.s8 %v3083
    %v3085 = vlaneseq
    %v3086 = vshrl.u32 %v3085, 7
    %v3087 = vsub.s32 %v3084, %v3086
    %v3088 = vrot.slane %v3081, %v3087
    %v3089 = vcombine.high %v3088, 0.0
    %v3090 = vcombine.low %v2758, %v2786
    %v3092 = vunpack.c.l.s4 1934713408
    %v3093 = vunpack.c.0.s8 %v3092
    %v3094 = vlaneseq
    %v3095 = vshrl.u32 %v3094, 7
    %v3096 = vsub.s32 %v3093, %v3095
    %v3097 = vrot.slane %v3090, %v3096
    %v3098 = vcombine.high %v3097, 0.0
    %v3099 = vcombine.low %v2814, %v2842
    %v3101 = vunpack.c.l.s4 1934713408
    %v3102 = vunpack.c.0.s8 %v3101
    %v3103 = vlaneseq
    %v3104 = vshrl.u32 %v3103, 7
    %v3105 = vsub.s32 %v3102, %v3104
    %v3106 = vrot.slane %v3099, %v3105
    %v3107 = vcombine.high %v3106, 0.0
    %v3108 = vcombine.low %v2653, %v2681
    %v3110 = vunpack.c.l.s4 1934713408
    %v3111 = vunpack.c.0.s8 %v3110
    %v3112 = vlaneseq
    %v3113 = vshrl.u32 %v3112, 7
    %v3114 = vsub.s32 %v3111, %v3113
    %v3115 = vrot.slane %v3108, %v3114
    %v3116 = vcombine.high %v3115, 0.0
    %v3117 = vcombine.low %v2709, %v2737
    %v3119 = vunpack.c.l.s4 1934713408
    %v3120 = vunpack.c.0.s8 %v3119
    %v3121 = vlaneseq
    %v3122 = vshrl.u32 %v3121, 7
    %v3123 = vsub.s32 %v3120, %v3122
    %v3124 = vrot.slane %v3117, %v3123
    %v3125 = vcombine.high %v3124, 0.0
    %v3126 = vcombine.low %v2765, %v2793
    %v3128 = vunpack.c.l.s4 1934713408
    %v3129 = vunpack.c.0.s8 %v3128
    %v3130 = vlaneseq
    %v3131 = vshrl.u32 %v3130, 7
    %v3132 = vsub.s32 %v3129, %v3131
    %v3133 = vrot.slane %v3126, %v3132
    %v3134 = vcombine.high %v3133, 0.0
    %v3135 = vcombine.low %v2821, %v2849
    %v3137 = vunpack.c.l.s4 1934713408
    %v3138 = vunpack.c.0.s8 %v3137
    %v3139 = vlaneseq
    %v3140 = vshrl.u32 %v3139, 7
    %v3141 = vsub.s32 %v3138, %v3140
    %v3142 = vrot.slane %v3135, %v3141
    %v3143 = vcombine.high %v3142, 0.0
    %v3144 = vcombine.low %v2660, %v2688
    %v3146 = vunpack.c.l.s4 1934713408
    %v3147 = vunpack.c.0.s8 %v3146
    %v3148 = vlaneseq
    %v3149 = vshrl.u32 %v3148, 7
    %v3150 = vsub.s32 %v3147, %v3149
    %v3151 = vrot.slane %v3144, %v3150
    %v3152 = vcombine.high %v3151, 0.0
    %v3153 = vcombine.low %v2716, %v2744
    %v3155 = vunpack.c.l.s4 1934713408
    %v3156 = vunpack.c.0.s8 %v3155
    %v3157 = vlaneseq
    %v3158 = vshrl.u32 %v3157, 7
    %v3159 = vsub.s32 %v3156, %v3158
    %v3160 = vrot.slane %v3153, %v3159
    %v3161 = vcombine.high %v3160, 0.0
    %v3162 = vcombine.low %v2772, %v2800
    %v3164 = vunpack.c.l.s4 1934713408
    %v3165 = vunpack.c.0.s8 %v3164
    %v3166 = vlaneseq
    %v3167 = vshrl.u32 %v3166, 7
    %v3168 = vsub.s32 %v3165, %v3167
    %v3169 = vrot.slane %v3162, %v3168
    %v3170 = vcombine.high %v3169, 0.0
    %v3171 = vcombine.low %v2828, %v2856
    %v3173 = vunpack.c.l.s4 1934713408
    %v3174 = vunpack.c.0.s8 %v3173
    %v3175 = vlaneseq
    %v3176 = vshrl.u32 %v3175, 7
    %v3177 = vsub.s32 %v3174, %v3176
    %v3178 = vrot.slane %v3171, %v3177
    %v3179 = vcombine.high %v3178, 0.0
    %v3180 = vcombine.low %v2667, %v2695
    %v3182 = vunpack.c.l.s4 1934713408
    %v3183 = vunpack.c.0.s8 %v3182
    %v3184 = vlaneseq
    %v3185 = vshrl.u32 %v3184, 7
    %v3186 = vsub.s32 %v3183, %v3185
    %v3187 = vrot.slane %v3180, %v3186
    %v3188 = vcombine.high %v3187, 0.0
    %v3189 = vcombine.low %v2723, %v2751
    %v3191 = vunpack.c.l.s4 1934713408
    %v3192 = vunpack.c.0.s8 %v3191
    %v3193 = vlaneseq
    %v3194 = vshrl.u32 %v3193, 7
    %v3195 = vsub.s32 %v3192, %v3194
    %v3196 = vrot.slane %v3189, %v3195
    %v3197 = vcombine.high %v3196, 0.0
    %v3198 = vcombine.low %v2779, %v2807
    %v3200 = vunpack.c.l.s4 1934713408
    %v3201 = vunpack.c.0.s8 %v3200
    %v3202 = vlaneseq
    %v3203 = vshrl.u32 %v3202, 7
    %v3204 = vsub.s32 %v3201, %v3203
    %v3205 = vrot.slane %v3198, %v3204
    %v3206 = vcombine.high %v3205, 0.0
    %v3207 = vcombine.low %v2835, %v2863
    %v3209 = vunpack.c.l.s4 1934713408
    %v3210 = vunpack.c.0.s8 %v3209
    %v3211 = vlaneseq
    %v3212 = vshrl.u32 %v3211, 7
    %v3213 = vsub.s32 %v3210, %v3212
    %v3214 = vrot.slane %v3207, %v3213
    %v3215 = vcombine.high %v3214, 0.0
    %v3224 = vcombine.low %v2935, %v2944
    %v3225 = vcombine.low %v2953, %v2962
    %v3227 = vunpack.c.l.s4 1983009808
    %v3228 = vunpack.c.0.s8 %v3227
    %v3229 = vlaneseq
    %v3230 = vshrl.u32 %v3229, 7
    %v3231 = vsub.s32 %v3228, %v3230
    %v3232 = vrot.slane %v3224, %v3231
    %v3234 = vunpack.c.l.s4 1983009808
    %v3235 = vunpack.c.0.s8 %v3234
    %v3236 = vlaneseq
    %v3237 = vshrl.u32 %v3236, 7
    %v3238 = vsub.s32 %v3235, %v3237
    %v3239 = vrot.slane %v3225, %v3238
    %v3240 = vcombine.low %v3232, %v3239
    %v3241 = vcombine.low %v3079, %v3088
    %v3242 = vcombine.low %v3097, %v3106
    %v3244 = vunpack.c.l.s4 1983009808
    %v3245 = vunpack.c.0.s8 %v3244
    %v3246 = vlaneseq
    %v3247 = vshrl.u32 %v3246, 7
    %v3248 = vsub.s32 %v3245, %v3247
    %v3249 = vrot.slane %v3241, %v3248
    %v3251 = vunpack.c.l.s4 1983009808
    %v3252 = vunpack.c.0.s8 %v3251
    %v3253 = vlaneseq
    %v3254 = vshrl.u32 %v3253, 7
    %v3255 = vsub.s32 %v3252, %v3254
    %v3256 = vrot.slane %v3242, %v3255
    %v3257 = vcombine.low %v3249, %v3256
    %v3268 = vcombine.low %v2936, %v2945
    %v3269 = vcombine.low %v2954, %v2963
    %v3271 = vunpack.c.l.s4 1983009808
    %v3272 = vunpack.c.0.s8 %v3271
    %v3273 = vlaneseq
    %v3274 = vshrl.u32 %v3273, 7
    %v3275 = vsub.s32 %v3272, %v3274
    %v3276 = vrot.slane %v3268, %v3275
    %v3278 = vunpack.c.l.s4 1983009808
    %v3279 = vunpack.c.0.s8 %v3278
    %v3280 = vlaneseq
    %v3281 = vshrl.u32 %v3280, 7
    %v3282 = vsub.s32 %v3279, %v3281
    %v3283 = vrot.slane %v3269, %v3282
    %v3284 = vcombine.low %v3276, %v3283
    %v3285 = vcombine.low %v3080, %v3089
    %v3286 = vcombine.low %v3098, %v3107
    %v3288 = vunpack.c.l.s4 1983009808
    %v3289 = vunpack.c.0.s8 %v3288
    %v3290 = vlaneseq
    %v3291 = vshrl.u32 %v3290, 7
    %v3292 = vsub.s32 %v3289, %v3291
    %v3293 = vrot.slane %v3285, %v3292
    %v3295 = vunpack.c.l.s4 1983009808
    %v3296 = vunpack.c.0.s8 %v3295
    %v3297 = vlaneseq
    %v3298 = vshrl.u32 %v3297, 7
    %v3299 = vsub.s32 %v3296, %v3298
    %v3300 = vrot.slane %v3286, %v3299
    %v3301 = vcombine.low %v3293, %v3300
    %3302 = vrot.lane.b32.xlu0 %v3284, 8
    %v3303 = vpop.permute.xlu0 %3302
    %3304 = vrot.lane.b32.xlu0 %v3301, 8
    %v3305 = vpop.permute.xlu0 %3304
    %v3316 = vcombine.low %v2971, %v2980
    %v3317 = vcombine.low %v2989, %v2998
    %v3319 = vunpack.c.l.s4 1983009808
    %v3320 = vunpack.c.0.s8 %v3319
    %v3321 = vlaneseq
    %v3322 = vshrl.u32 %v3321, 7
    %v3323 = vsub.s32 %v3320, %v3322
    %v3324 = vrot.slane %v3316, %v3323
    %v3326 = vunpack.c.l.s4 1983009808
    %v3327 = vunpack.c.0.s8 %v3326
    %v3328 = vlaneseq
    %v3329 = vshrl.u32 %v3328, 7
    %v3330 = vsub.s32 %v3327, %v3329
    %v3331 = vrot.slane %v3317, %v3330
    %v3332 = vcombine.low %v3324, %v3331
    %v3333 = vcombine.low %v3115, %v3124
    %v3334 = vcombine.low %v3133, %v3142
    %v3336 = vunpack.c.l.s4 1983009808
    %v3337 = vunpack.c.0.s8 %v3336
    %v3338 = vlaneseq
    %v3339 = vshrl.u32 %v3338, 7
    %v3340 = vsub.s32 %v3337, %v3339
    %v3341 = vrot.slane %v3333, %v3340
    %v3343 = vunpack.c.l.s4 1983009808
    %v3344 = vunpack.c.0.s8 %v3343
    %v3345 = vlaneseq
    %v3346 = vshrl.u32 %v3345, 7
    %v3347 = vsub.s32 %v3344, %v3346
    %v3348 = vrot.slane %v3334, %v3347
    %v3349 = vcombine.low %v3341, %v3348
    %3350 = vrot.lane.b32.xlu0 %v3332, 16
    %v3351 = vpop.permute.xlu0 %3350
    %3352 = vrot.lane.b32.xlu0 %v3349, 16
    %v3353 = vpop.permute.xlu0 %3352
    %v3364 = vcombine.low %v2972, %v2981
    %v3365 = vcombine.low %v2990, %v2999
    %v3367 = vunpack.c.l.s4 1983009808
    %v3368 = vunpack.c.0.s8 %v3367
    %v3369 = vlaneseq
    %v3370 = vshrl.u32 %v3369, 7
    %v3371 = vsub.s32 %v3368, %v3370
    %v3372 = vrot.slane %v3364, %v3371
    %v3374 = vunpack.c.l.s4 1983009808
    %v3375 = vunpack.c.0.s8 %v3374
    %v3376 = vlaneseq
    %v3377 = vshrl.u32 %v3376, 7
    %v3378 = vsub.s32 %v3375, %v3377
    %v3379 = vrot.slane %v3365, %v3378
    %v3380 = vcombine.low %v3372, %v3379
    %v3381 = vcombine.low %v3116, %v3125
    %v3382 = vcombine.low %v3134, %v3143
    %v3384 = vunpack.c.l.s4 1983009808
    %v3385 = vunpack.c.0.s8 %v3384
    %v3386 = vlaneseq
    %v3387 = vshrl.u32 %v3386, 7
    %v3388 = vsub.s32 %v3385, %v3387
    %v3389 = vrot.slane %v3381, %v3388
    %v3391 = vunpack.c.l.s4 1983009808
    %v3392 = vunpack.c.0.s8 %v3391
    %v3393 = vlaneseq
    %v3394 = vshrl.u32 %v3393, 7
    %v3395 = vsub.s32 %v3392, %v3394
    %v3396 = vrot.slane %v3382, %v3395
    %v3397 = vcombine.low %v3389, %v3396
    %3398 = vrot.lane.b32.xlu0 %v3380, 24
    %v3399 = vpop.permute.xlu0 %3398
    %3400 = vrot.lane.b32.xlu0 %v3397, 24
    %v3401 = vpop.permute.xlu0 %3400
    %v3412 = vcombine.low %v3007, %v3016
    %v3413 = vcombine.low %v3025, %v3034
    %v3415 = vunpack.c.l.s4 1983009808
    %v3416 = vunpack.c.0.s8 %v3415
    %v3417 = vlaneseq
    %v3418 = vshrl.u32 %v3417, 7
    %v3419 = vsub.s32 %v3416, %v3418
    %v3420 = vrot.slane %v3412, %v3419
    %v3422 = vunpack.c.l.s4 1983009808
    %v3423 = vunpack.c.0.s8 %v3422
    %v3424 = vlaneseq
    %v3425 = vshrl.u32 %v3424, 7
    %v3426 = vsub.s32 %v3423, %v3425
    %v3427 = vrot.slane %v3413, %v3426
    %v3428 = vcombine.low %v3420, %v3427
    %v3429 = vcombine.low %v3151, %v3160
    %v3430 = vcombine.low %v3169, %v3178
    %v3432 = vunpack.c.l.s4 1983009808
    %v3433 = vunpack.c.0.s8 %v3432
    %v3434 = vlaneseq
    %v3435 = vshrl.u32 %v3434, 7
    %v3436 = vsub.s32 %v3433, %v3435
    %v3437 = vrot.slane %v3429, %v3436
    %v3439 = vunpack.c.l.s4 1983009808
    %v3440 = vunpack.c.0.s8 %v3439
    %v3441 = vlaneseq
    %v3442 = vshrl.u32 %v3441, 7
    %v3443 = vsub.s32 %v3440, %v3442
    %v3444 = vrot.slane %v3430, %v3443
    %v3445 = vcombine.low %v3437, %v3444
    %3446 = vrot.lane.b32.xlu0 %v3428, 32
    %v3447 = vpop.permute.xlu0 %3446
    %3448 = vrot.lane.b32.xlu0 %v3445, 32
    %v3449 = vpop.permute.xlu0 %3448
    %v3460 = vcombine.low %v3008, %v3017
    %v3461 = vcombine.low %v3026, %v3035
    %v3463 = vunpack.c.l.s4 1983009808
    %v3464 = vunpack.c.0.s8 %v3463
    %v3465 = vlaneseq
    %v3466 = vshrl.u32 %v3465, 7
    %v3467 = vsub.s32 %v3464, %v3466
    %v3468 = vrot.slane %v3460, %v3467
    %v3470 = vunpack.c.l.s4 1983009808
    %v3471 = vunpack.c.0.s8 %v3470
    %v3472 = vlaneseq
    %v3473 = vshrl.u32 %v3472, 7
    %v3474 = vsub.s32 %v3471, %v3473
    %v3475 = vrot.slane %v3461, %v3474
    %v3476 = vcombine.low %v3468, %v3475
    %v3477 = vcombine.low %v3152, %v3161
    %v3478 = vcombine.low %v3170, %v3179
    %v3480 = vunpack.c.l.s4 1983009808
    %v3481 = vunpack.c.0.s8 %v3480
    %v3482 = vlaneseq
    %v3483 = vshrl.u32 %v3482, 7
    %v3484 = vsub.s32 %v3481, %v3483
    %v3485 = vrot.slane %v3477, %v3484
    %v3487 = vunpack.c.l.s4 1983009808
    %v3488 = vunpack.c.0.s8 %v3487
    %v3489 = vlaneseq
    %v3490 = vshrl.u32 %v3489, 7
    %v3491 = vsub.s32 %v3488, %v3490
    %v3492 = vrot.slane %v3478, %v3491
    %v3493 = vcombine.low %v3485, %v3492
    %3494 = vrot.lane.b32.xlu0 %v3476, 40
    %v3495 = vpop.permute.xlu0 %3494
    %3496 = vrot.lane.b32.xlu0 %v3493, 40
    %v3497 = vpop.permute.xlu0 %3496
    %v3508 = vcombine.low %v3043, %v3052
    %v3509 = vcombine.low %v3061, %v3070
    %v3511 = vunpack.c.l.s4 1983009808
    %v3512 = vunpack.c.0.s8 %v3511
    %v3513 = vlaneseq
    %v3514 = vshrl.u32 %v3513, 7
    %v3515 = vsub.s32 %v3512, %v3514
    %v3516 = vrot.slane %v3508, %v3515
    %v3518 = vunpack.c.l.s4 1983009808
    %v3519 = vunpack.c.0.s8 %v3518
    %v3520 = vlaneseq
    %v3521 = vshrl.u32 %v3520, 7
    %v3522 = vsub.s32 %v3519, %v3521
    %v3523 = vrot.slane %v3509, %v3522
    %v3524 = vcombine.low %v3516, %v3523
    %v3525 = vcombine.low %v3187, %v3196
    %v3526 = vcombine.low %v3205, %v3214
    %v3528 = vunpack.c.l.s4 1983009808
    %v3529 = vunpack.c.0.s8 %v3528
    %v3530 = vlaneseq
    %v3531 = vshrl.u32 %v3530, 7
    %v3532 = vsub.s32 %v3529, %v3531
    %v3533 = vrot.slane %v3525, %v3532
    %v3535 = vunpack.c.l.s4 1983009808
    %v3536 = vunpack.c.0.s8 %v3535
    %v3537 = vlaneseq
    %v3538 = vshrl.u32 %v3537, 7
    %v3539 = vsub.s32 %v3536, %v3538
    %v3540 = vrot.slane %v3526, %v3539
    %v3541 = vcombine.low %v3533, %v3540
    %3542 = vrot.lane.b32.xlu0 %v3524, 48
    %v3543 = vpop.permute.xlu0 %3542
    %3544 = vrot.lane.b32.xlu0 %v3541, 48
    %v3545 = vpop.permute.xlu0 %3544
    %v3556 = vcombine.low %v3044, %v3053
    %v3557 = vcombine.low %v3062, %v3071
    %v3559 = vunpack.c.l.s4 1983009808
    %v3560 = vunpack.c.0.s8 %v3559
    %v3561 = vlaneseq
    %v3562 = vshrl.u32 %v3561, 7
    %v3563 = vsub.s32 %v3560, %v3562
    %v3564 = vrot.slane %v3556, %v3563
    %v3566 = vunpack.c.l.s4 1983009808
    %v3567 = vunpack.c.0.s8 %v3566
    %v3568 = vlaneseq
    %v3569 = vshrl.u32 %v3568, 7
    %v3570 = vsub.s32 %v3567, %v3569
    %v3571 = vrot.slane %v3557, %v3570
    %v3572 = vcombine.low %v3564, %v3571
    %v3573 = vcombine.low %v3188, %v3197
    %v3574 = vcombine.low %v3206, %v3215
    %v3576 = vunpack.c.l.s4 1983009808
    %v3577 = vunpack.c.0.s8 %v3576
    %v3578 = vlaneseq
    %v3579 = vshrl.u32 %v3578, 7
    %v3580 = vsub.s32 %v3577, %v3579
    %v3581 = vrot.slane %v3573, %v3580
    %v3583 = vunpack.c.l.s4 1983009808
    %v3584 = vunpack.c.0.s8 %v3583
    %v3585 = vlaneseq
    %v3586 = vshrl.u32 %v3585, 7
    %v3587 = vsub.s32 %v3584, %v3586
    %v3588 = vrot.slane %v3574, %v3587
    %v3589 = vcombine.low %v3581, %v3588
    %3590 = vrot.lane.b32.xlu0 %v3572, 56
    %v3591 = vpop.permute.xlu0 %3590
    %3592 = vrot.lane.b32.xlu0 %v3589, 56
    %v3593 = vpop.permute.xlu0 %3592
    %v3596 = vsel %vm403, %v3240, %v3303
    %v3597 = vsel %vm403, %v3257, %v3305
    %vm3598 = vcmask 130048
    %v3599 = vsel %vm3598, %v3596, %v3351
    %v3600 = vsel %vm3598, %v3597, %v3353
    %vm3601 = vcmask 195584
    %v3602 = vsel %vm3601, %v3599, %v3399
    %v3603 = vsel %vm3601, %v3600, %v3401
    %vm3604 = vcmask 261120
    %v3605 = vsel %vm3604, %v3602, %v3447
    %v3606 = vsel %vm3604, %v3603, %v3449
    %vm3607 = vcmask 326656
    %v3608 = vsel %vm3607, %v3605, %v3495
    %v3609 = vsel %vm3607, %v3606, %v3497
    %vm3610 = vcmask 392192
    %v3611 = vsel %vm3610, %v3608, %v3543
    %v3612 = vsel %vm3610, %v3609, %v3545
    %vm3613 = vcmask 457728
    %v3614 = vsel %vm3613, %v3611, %v3591
    %v3615 = vsel %vm3613, %v3612, %v3593
    %vm3616 = vcmask 523264
    %3617 = vst.msk [vmem:[#allocation2] sm:$0xff] %vm3616, %v3614
    %3618 = vst.msk [vmem:[#allocation2 + $0x8] sm:$0xff] %vm3616, %v3615
    // Predicated region
    $region18: #{tpu_custom_call.1} parent=1 // pred_check
      _
    $region19: #{tpu_custom_call.1} parent=1 // pred_check_branch
      %3620 = sbr.rel (0) target = $region21
    $region20: #{tpu_custom_call.1} parent=1 // pred_region
      %s3622 = ssub.s32 256, 256
      %3623 = vsyncadd [#allocation3], %s3622
      %s3624 = sshll.u32 [#allocation2], 4
      %s3625 = int_to_ptr.vmem [resolvable:$true] %s3624
      %3630 = dma.vmem_to_hbm [thread:$0]  %s3625, 256, %s4, [#allocation3], 128, 128, 8
    $region21: #{tpu_custom_call.1} parent=1 // pred_fallthru
      _
    // Predicated region
    $region22: #{tpu_custom_call.1} parent=1 // pred_check
      _
    $region23: #{tpu_custom_call.1} parent=1 // pred_check_branch
      %3632 = sbr.rel (0) target = $region25
    $region24: #{tpu_custom_call.1} parent=1 // pred_region
      %3633 = dma.done [#allocation3], 256
    $region25: #{tpu_custom_call.1} parent=1 // pred_fallthru
      _
    %3634 = vsyncpa [#allocation3], 1

</llo_original>
